<compile_context>
chip_gen: v7x
topology: tpu7x:2x2x1
jax: 0.10.0
libtpu: 0.0.40
codegen_flags: <defaults>
</compile_context>

<pallas_src>
import functools

import jax
import jax.numpy as jnp
from jax import lax
from jax.experimental import pallas as pl
from jax.experimental.pallas import tpu as pltpu


def _round_up(n, m):
    return ((n + m - 1) // m) * m


def _temporal_block_kernel(x_ref, w1_ref, w2_ref, *rest,
                           L, pad, pad_al, dil, k, has_downsample):
    """Fused TemporalBlock forward for one batch block.

    x_ref:   (BB, Lx, C_in)        zero-padded (time + channels), channels-last, f32
    w1_ref:  (k*C_in,  C_out)      conv1 taps concatenated along the contraction axis
    w2_ref:  (k*C_out, C_out)      conv2 taps concatenated along the contraction axis
    wd_ref:  (C_in, C_out)         1x1 downsample weights (only when has_downsample)
    aff_ref: (5, C_out) f32        rows: [scale1, shift1, scale2, shift2, bias_d]
    out_ref: (BB*L, C_out)         lane-dense output slab
    hpad_ref:(BB, pad_al+L+pad_r, C_out)  VMEM scratch for the re-padded intermediate
    """
    if has_downsample:
        wd_ref, aff_ref, out_ref, hpad_ref = rest
    else:
        wd_ref = None
        aff_ref, out_ref, hpad_ref = rest

    BB = x_ref.shape[0]
    C_in = x_ref.shape[2]
    C_out = out_ref.shape[1]

    x = x_ref[...]                               # (BB, Lx, C_in) input dtype (f32)
    xm = x.astype(w1_ref.dtype)                  # matmul-operand copy (bf16 on MXU path)
    aff = aff_ref[...]                           # (5, C_out) f32
    s1, t1, s2, t2 = aff[0:1], aff[1:2], aff[2:3], aff[3:4]

    # ---- conv1: ONE matmul, K = k*C_in (dilated taps concatenated along channels).
    x_cat = jnp.concatenate(
        [xm[:, t * dil:t * dil + L, :] for t in range(k)], axis=-1,
    ).reshape(BB * L, k * C_in)
    acc1 = jnp.dot(x_cat, w1_ref[...], preferred_element_type=jnp.float32)
    h1 = jnp.maximum(acc1 * s1 + t1, 0.0)        # folded conv bias + BN1, then ReLU
    # TODO(synk): dropout1/dropout2 are inference no-ops; training-mode dropout would
    # build keep-masks with pltpu.prng_seed / pltpu.prng_random_bits here.
    # TODO(synk): at production BB*L, chunk the f32 epilogues (this one and below) so
    # acc/h slabs stay within the 64-vreg file instead of spilling to VMEM.

    # ---- re-pad the intermediate in VMEM scratch for conv2.  Only the pad strips are
    # zeroed (cheap, every step -> safe under megacore-sharded scratch); the interior
    # store lands at a sublane-aligned offset (pad_al % 8 == 0).
    Lh = hpad_ref.shape[1]
    if pad:
        hpad_ref[:, :pad_al, :] = jnp.zeros((BB, pad_al, C_out), hpad_ref.dtype)
        hpad_ref[:, pad_al + L:, :] = jnp.zeros((BB, Lh - pad_al - L, C_out),
                                                hpad_ref.dtype)
    hpad_ref[:, pad_al:pad_al + L, :] = h1.reshape(BB, L, C_out).astype(hpad_ref.dtype)
    hp = hpad_ref[...]

    # ---- conv2: same single-matmul scheme, K = k*C_out.
    off0 = pad_al - pad
    h_cat = jnp.concatenate(
        [hp[:, off0 + t * dil:off0 + t * dil + L, :] for t in range(k)], axis=-1,
    ).reshape(BB * L, k * C_out)
    acc2 = jnp.dot(h_cat, w2_ref[...], preferred_element_type=jnp.float32)
    h2 = jnp.maximum(acc2 * s2 + t2, 0.0)

    # ---- residual path.
    if has_downsample:
        xr = xm[:, pad:pad + L, :].reshape(BB * L, C_in)
        res = jnp.dot(xr, wd_ref[...], preferred_element_type=jnp.float32) + aff[4:5]
    else:
        # Identity skip: add x exactly (f32, no MXU pass, no bf16 rounding).
        res = x[:, pad:pad + L, :].reshape(BB * L, C_in).astype(jnp.float32)

    out_ref[...] = jnp.maximum(h2 + res, 0.0).astype(out_ref.dtype)


def temporal_block(x, params, *, stride, padding, dilation, eps=1e-5,
                   matmul_dtype=jnp.bfloat16, batch_block=None,
                   channels_last_out=False):
    """Inference forward of TemporalBlock.  x: (B, C_in, L) -> (B, C_out, L)."""
    B, C_in, L = x.shape
    w1, w2 = params["w1"], params["w2"]
    C_out, _, k = w1.shape

    # TODO(synk): stride != 1 changes the output length and breaks the residual add in
    # the original module too; only stride == 1 is supported here.
    assert stride == 1
    assert 2 * padding == dilation * (k - 1), (
        "residual add requires a length-preserving conv (2*padding == dilation*(k-1))")

    has_downsample = params.get("wd") is not None
    if not has_downsample:
        assert C_in == C_out

    # Lane/sublane friendly padded sizes.
    C_in_p = _round_up(C_in, 128)
    C_out_p = _round_up(C_out, 128)
    pad_al = _round_up(padding, 8)                 # sublane-aligned left pad for hpad
    pad_r = _round_up(padding, 8)                  # right pad strip (aligned strip zero)
    Lx = _round_up(L + 2 * padding, 8)             # padded input time length (mult of 8)
    Lh = pad_al + L + pad_r                        # hpad scratch time length

    # Fold conv bias + BatchNorm running stats into one per-channel scale/shift.
    def fold(b, g, beta, mean, var):
        scale = g / jnp.sqrt(var + eps)
        return scale, (b - mean) * scale + beta

    s1, t1 = fold(params["b1"], params["g1"], params["be1"], params["m1"], params["v1"])
    s2, t2 = fold(params["b2"], params["g2"], params["be2"], params["m2"], params["v2"])

    def cpad(a, axis, target):
        w = [(0, 0)] * a.ndim
        w[axis] = (0, target - a.shape[axis])
        return jnp.pad(a, w)

    # Per-tap weights with taps concatenated along the contraction axis:
    # torch (C_out, C_in, k) -> (k, C_in, C_out) -> zero-pad channels -> (k*C_in_p, C_out_p).
    w1_k = cpad(cpad(jnp.transpose(w1, (2, 1, 0)), 1, C_in_p), 2, C_out_p)
    w1_k = w1_k.reshape(k * C_in_p, C_out_p).astype(matmul_dtype)
    w2_k = cpad(cpad(jnp.transpose(w2, (2, 1, 0)), 1, C_out_p), 2, C_out_p)
    w2_k = w2_k.reshape(k * C_out_p, C_out_p).astype(matmul_dtype)

    if has_downsample:
        wd_k = cpad(cpad(params["wd"][:, :, 0].T, 0, C_in_p), 1, C_out_p).astype(matmul_dtype)
        bd = cpad(params["bd"], 0, C_out_p)
    else:
        wd_k = None
        bd = jnp.zeros((C_out_p,), jnp.float32)

    aff = jnp.stack([cpad(s1, 0, C_out_p), cpad(t1, 0, C_out_p),
                     cpad(s2, 0, C_out_p), cpad(t2, 0, C_out_p), bd]).astype(jnp.float32)

    # Channels-last x, zero-padded in time (to Lx) and channels (to C_in_p).  Kept in the
    # input dtype: matmul operands are cast in-kernel, so the identity residual adds x
    # exactly.  Wrapper-side pad/transpose is layout plumbing, not compute.
    x_cl = jnp.transpose(x, (0, 2, 1))
    x_pad = jnp.pad(x_cl, ((0, 0), (padding, Lx - L - padding), (0, C_in_p - C_in)))

    # Batch blocking: >= 2 grid steps by default so the input DMA pipelines and the
    # "parallel" batch axis can shard across v7x's two TensorCores.
    if batch_block is None:
        BB = next((d for d in range(B // 2, 0, -1) if B % d == 0), 1) if B > 1 else 1
    else:
        BB = batch_block
    assert B % BB == 0
    nb = B // BB

    kernel = functools.partial(
        _temporal_block_kernel, L=L, pad=padding, pad_al=pad_al, dil=dilation, k=k,
        has_downsample=has_downsample)

    out_dtype = x.dtype
    mm_bytes = jnp.dtype(matmul_dtype).itemsize
    io_bytes = jnp.dtype(out_dtype).itemsize

    # VMEM budget per step: 2x-buffered x/out blocks, single-buffered weights, the hpad
    # scratch, plus matmul/f32 temporaries.  Keep this under ~64 MiB for v7x (128 MiB on
    # v5e/v6e) by shrinking batch_block (or adding a time-chunk grid axis with a
    # dilation*(k-1) halo at production sequence lengths).
    weight_bytes = (w1_k.size + w2_k.size
                    + (wd_k.size if has_downsample else 0)) * mm_bytes
    est = (2 * BB * Lx * C_in_p * io_bytes
           + 2 * BB * L * C_out_p * io_bytes
           + weight_bytes + aff.size * 4
           + BB * Lh * C_out_p * mm_bytes
           + BB * L * (2 * k * max(C_in_p, C_out_p) * mm_bytes + 6 * C_out_p * 4))
    vmem_limit = int(min(112 * 2 ** 20, max(32 * 2 ** 20, 2 * est)))

    flops = 2 * B * L * k * (C_in_p + C_out_p) * C_out_p
    if has_downsample:
        flops += 2 * B * L * C_in_p * C_out_p
    bytes_accessed = (x_pad.size * io_bytes + weight_bytes + aff.size * 4
                      + B * L * C_out_p * io_bytes)

    def _run(single_buffer_invariants):
        # Grid-invariant operands (constant index_map): the second pipeline buffer is
        # pure VMEM waste, so request a single buffer.
        inv = (dict(pipeline_mode=pl.Buffered(1)) if single_buffer_invariants else {})
        in_specs = [
            pl.BlockSpec((BB, Lx, C_in_p), lambda i: (i, 0, 0)),
            pl.BlockSpec((k * C_in_p, C_out_p), lambda i: (0, 0), **inv),
            pl.BlockSpec((k * C_out_p, C_out_p), lambda i: (0, 0), **inv),
        ]
        inputs = [x_pad, w1_k, w2_k]
        if has_downsample:
            in_specs.append(pl.BlockSpec((C_in_p, C_out_p), lambda i: (0, 0), **inv))
            inputs.append(wd_k)
        in_specs.append(pl.BlockSpec((5, C_out_p), lambda i: (0, 0), **inv))
        inputs.append(aff)

        return pl.pallas_call(
            kernel,
            out_shape=jax.ShapeDtypeStruct((B * L, C_out_p), out_dtype),
            grid_spec=pltpu.PrefetchScalarGridSpec(
                num_scalar_prefetch=0,
                grid=(nb,),
                in_specs=in_specs,
                out_specs=pl.BlockSpec((BB * L, C_out_p), lambda i: (i, 0)),
                scratch_shapes=[pltpu.VMEM((BB, Lh, C_out_p), matmul_dtype)],
            ),
            compiler_params=pltpu.CompilerParams(
                dimension_semantics=("parallel",),
                vmem_limit_bytes=vmem_limit),
            cost_estimate=pl.CostEstimate(flops=int(flops), transcendentals=0,
                                          bytes_accessed=int(bytes_accessed)),
        )(*inputs)

    try:
        out_flat = _run(True)
    except Exception:
        # TODO(synk): fallback for jax versions without BlockSpec.pipeline_mode support
        # (weights fall back to default double-buffering; everything else unchanged).
        out_flat = _run(False)

    out = out_flat.reshape(B, L, C_out_p)[:, :, :C_out]
    if channels_last_out:
        return out                                 # (B, L, C_out): skips a full HBM round-trip
    return jnp.transpose(out, (0, 2, 1))           # torch layout (B, C_out, L)


def _reference(x, p, *, stride, padding, dilation, eps=1e-5):
    """Pure-JAX reference of the torch forward (eval mode), for sanity checking."""
    def conv1d(inp, w, b, pad, dil):
        y = lax.conv_general_dilated(
            inp, w, window_strides=(stride,), padding=[(pad, pad)],
            rhs_dilation=(dil,), dimension_numbers=("NCH", "OIH", "NCH"),
            precision=lax.Precision.HIGHEST)
        return y + b[None, :, None]

    def bn(y, g, beta, mean, var):
        inv = 1.0 / jnp.sqrt(var + eps)
        return (y - mean[None, :, None]) * (g * inv)[None, :, None] + beta[None, :, None]

    out = jax.nn.relu(bn(conv1d(x, p["w1"], p["b1"], padding, dilation),
                         p["g1"], p["be1"], p["m1"], p["v1"]))
    out = jax.nn.relu(bn(conv1d(out, p["w2"], p["b2"], padding, dilation),
                         p["g2"], p["be2"], p["m2"], p["v2"]))
    res = x if p.get("wd") is None else conv1d(x, p["wd"], p["bd"], 0, 1)
    return jax.nn.relu(out + res)


if __name__ == "__main__":
    K, STRIDE, DIL, PAD = 3, 1, 2, 2          # 2*PAD == DIL*(K-1) -> length preserved
    B, L = 2, 16

    def unif(key, shape, bound):
        return jax.random.uniform(key, shape, jnp.float32, -bound, bound)

    def make_params(seed, C_in, C_out, with_downsample):
        ks = jax.random.split(jax.random.PRNGKey(seed), 16)
        p = dict(
            # conv weights ~ N(0, 0.01) as in init_weights(); biases ~ torch default U.
            w1=0.01 * jax.random.normal(ks[1], (C_out, C_in, K), jnp.float32),
            b1=unif(ks[2], (C_out,), (C_in * K) ** -0.5),
            w2=0.01 * jax.random.normal(ks[3], (C_out, C_out, K), jnp.float32),
            b2=unif(ks[4], (C_out,), (C_out * K) ** -0.5),
            # BatchNorm (eval mode): gamma/beta + running mean/var.
            g1=1.0 + 0.1 * jax.random.normal(ks[7], (C_out,), jnp.float32),
            be1=0.1 * jax.random.normal(ks[8], (C_out,), jnp.float32),
            m1=0.1 * jax.random.normal(ks[9], (C_out,), jnp.float32),
            v1=jax.random.uniform(ks[10], (C_out,), jnp.float32, 0.5, 1.5),
            g2=1.0 + 0.1 * jax.random.normal(ks[11], (C_out,), jnp.float32),
            be2=0.1 * jax.random.normal(ks[12], (C_out,), jnp.float32),
            m2=0.1 * jax.random.normal(ks[13], (C_out,), jnp.float32),
            v2=jax.random.uniform(ks[14], (C_out,), jnp.float32, 0.5, 1.5),
        )
        if with_downsample:
            p["wd"] = 0.01 * jax.random.normal(ks[5], (C_out, C_in, 1), jnp.float32)
            p["bd"] = unif(ks[6], (C_out,), C_in ** -0.5)
        return p

    base = jax.random.PRNGKey(0)
    # Config A: C_in != C_out (1x1 downsample residual).  Config B: identity residual.
    for cfg_id, (C_in, C_out, with_ds) in enumerate([(4, 8, True), (8, 8, False)]):
        x = jax.random.normal(jax.random.fold_in(base, cfg_id), (B, C_in, L), jnp.float32)
        p = make_params(cfg_id, C_in, C_out, with_ds)
        ref = _reference(x, p, stride=STRIDE, padding=PAD, dilation=DIL)

        # f32 matmul path: tighter numerical check against the pure-JAX reference.
        out_f32 = jax.block_until_ready(
            temporal_block(x, p, stride=STRIDE, padding=PAD, dilation=DIL,
                           matmul_dtype=jnp.float32))
        assert out_f32.shape == (B, C_out, L)
        assert jnp.allclose(out_f32, ref, atol=5e-3, rtol=5e-3)

        # bf16 matmul operands (MXU-rate path), f32 accumulation / elementwise.
        out_bf16 = jax.block_until_ready(
            temporal_block(x, p, stride=STRIDE, padding=PAD, dilation=DIL,
                           matmul_dtype=jnp.bfloat16))
        assert out_bf16.shape == (B, C_out, L)
        assert jnp.allclose(out_bf16, ref, atol=2e-2, rtol=2e-2)

    print("KERNEL_OK")
</pallas_src>

<mosaic_0001>
module attributes {stable_mosaic.version = 11 : i64} {
  func.func @_temporal_block_kernel(%arg0: i32, %arg1: memref<1x24x128xf32, #tpu.memory_space<vmem>>, %arg2: memref<384x128xf32, #tpu.memory_space<vmem>>, %arg3: memref<384x128xf32, #tpu.memory_space<vmem>>, %arg4: memref<128x128xf32, #tpu.memory_space<vmem>>, %arg5: memref<5x128xf32, #tpu.memory_space<vmem>>, %arg6: memref<16x128xf32, #tpu.memory_space<vmem>>, %arg7: memref<1x32x128xf32, #tpu.memory_space<vmem>>) attributes {dimension_semantics = [#tpu.dimension_semantics<parallel>], iteration_bounds = array<i64: 2>, scalar_prefetch = 0 : i64, scratch_operands = 1 : i64, tpu.core_type = #tpu.core_type<tc>, window_params = [{transform_indices = @transform_0, window_bounds = array<i64: 1, 24, 128>}, {pipeline_mode = #tpu.pipeline_mode<synchronous>, transform_indices = @transform_1, window_bounds = array<i64: 384, 128>}, {pipeline_mode = #tpu.pipeline_mode<synchronous>, transform_indices = @transform_2, window_bounds = array<i64: 384, 128>}, {pipeline_mode = #tpu.pipeline_mode<synchronous>, transform_indices = @transform_3, window_bounds = array<i64: 128, 128>}, {pipeline_mode = #tpu.pipeline_mode<synchronous>, transform_indices = @transform_4, window_bounds = array<i64: 5, 128>}, {transform_indices = @transform_5, window_bounds = array<i64: 16, 128>}]} {
    %c0 = arith.constant 0 : index
    %c0_0 = arith.constant 0 : index
    %c0_1 = arith.constant 0 : index
    %0 = vector.load %arg1[%c0, %c0_0, %c0_1] : memref<1x24x128xf32, #tpu.memory_space<vmem>>, vector<1x24x128xf32>
    %c0_2 = arith.constant 0 : index
    %c0_3 = arith.constant 0 : index
    %1 = vector.load %arg5[%c0_2, %c0_3] : memref<5x128xf32, #tpu.memory_space<vmem>>, vector<5x128xf32>
    %2 = vector.extract_strided_slice %1 {offsets = [0, 0], sizes = [1, 128], strides = [1, 1]} : vector<5x128xf32> to vector<1x128xf32>
    %3 = vector.extract_strided_slice %1 {offsets = [1, 0], sizes = [1, 128], strides = [1, 1]} : vector<5x128xf32> to vector<1x128xf32>
    %4 = vector.extract_strided_slice %1 {offsets = [2, 0], sizes = [1, 128], strides = [1, 1]} : vector<5x128xf32> to vector<1x128xf32>
    %5 = vector.extract_strided_slice %1 {offsets = [3, 0], sizes = [1, 128], strides = [1, 1]} : vector<5x128xf32> to vector<1x128xf32>
    %6 = vector.extract_strided_slice %0 {offsets = [0, 0, 0], sizes = [1, 16, 128], strides = [1, 1, 1]} : vector<1x24x128xf32> to vector<1x16x128xf32>
    %7 = vector.extract_strided_slice %0 {offsets = [0, 2, 0], sizes = [1, 16, 128], strides = [1, 1, 1]} : vector<1x24x128xf32> to vector<1x16x128xf32>
    %8 = vector.extract_strided_slice %0 {offsets = [0, 4, 0], sizes = [1, 16, 128], strides = [1, 1, 1]} : vector<1x24x128xf32> to vector<1x16x128xf32>
    %9 = tpu.concatenate %6, %7, %8 in 2 : vector<1x16x128xf32>, vector<1x16x128xf32>, vector<1x16x128xf32> -> vector<1x16x384xf32>
    %10 = vector.shape_cast %9 : vector<1x16x384xf32> to vector<16x384xf32>
    %c0_4 = arith.constant 0 : index
    %c0_5 = arith.constant 0 : index
    %11 = vector.load %arg2[%c0_4, %c0_5] : memref<384x128xf32, #tpu.memory_space<vmem>>, vector<384x128xf32>
    %cst = arith.constant dense<0.000000e+00> : vector<16x128xf32>
    %12 = tpu.matmul %10, %11, %cst {dimension_numbers = #tpu.dot_dimension_numbers<[1], [0], [0], [1], [0, 0, 1, 1], [], []>} : vector<16x384xf32>, vector<384x128xf32>, vector<16x128xf32> -> vector<16x128xf32>
    %13 = vector.broadcast %2 : vector<1x128xf32> to vector<16x128xf32>
    %14 = arith.mulf %12, %13 : vector<16x128xf32>
    %15 = vector.broadcast %3 : vector<1x128xf32> to vector<16x128xf32>
    %16 = arith.addf %14, %15 : vector<16x128xf32>
    %cst_6 = arith.constant 0.000000e+00 : f32
    %17 = vector.broadcast %cst_6 : f32 to vector<16x128xf32>
    %18 = arith.maximumf %16, %17 : vector<16x128xf32>
    %cst_7 = arith.constant 0.000000e+00 : f32
    %19 = vector.broadcast %cst_7 : f32 to vector<1x8x128xf32>
    %c0_8 = arith.constant 0 : index
    %c0_9 = arith.constant 0 : index
    %c0_10 = arith.constant 0 : index
    %20 = vector.load %arg7[%c0_8, %c0_9, %c0_10] : memref<1x32x128xf32, #tpu.memory_space<vmem>>, vector<1x8x128xf32>
    tpu.vector_store %arg7[%c0_8, %c0_9, %c0_10], %19 {strides = array<i32>} : memref<1x32x128xf32, #tpu.memory_space<vmem>>, vector<1x8x128xf32>,
    %cst_11 = arith.constant 0.000000e+00 : f32
    %21 = vector.broadcast %cst_11 : f32 to vector<1x8x128xf32>
    %c0_12 = arith.constant 0 : index
    %c24 = arith.constant 24 : index
    %c0_13 = arith.constant 0 : index
    %22 = vector.load %arg7[%c0_12, %c24, %c0_13] : memref<1x32x128xf32, #tpu.memory_space<vmem>>, vector<1x8x128xf32>
    tpu.vector_store %arg7[%c0_12, %c24, %c0_13], %21 {strides = array<i32>} : memref<1x32x128xf32, #tpu.memory_space<vmem>>, vector<1x8x128xf32>,
    %23 = vector.shape_cast %18 : vector<16x128xf32> to vector<1x16x128xf32>
    %c0_14 = arith.constant 0 : index
    %c8 = arith.constant 8 : index
    %c0_15 = arith.constant 0 : index
    %24 = vector.load %arg7[%c0_14, %c8, %c0_15] : memref<1x32x128xf32, #tpu.memory_space<vmem>>, vector<1x16x128xf32>
    tpu.vector_store %arg7[%c0_14, %c8, %c0_15], %23 {strides = array<i32>} : memref<1x32x128xf32, #tpu.memory_space<vmem>>, vector<1x16x128xf32>,
    %c0_16 = arith.constant 0 : index
    %c0_17 = arith.constant 0 : index
    %c0_18 = arith.constant 0 : index
    %25 = vector.load %arg7[%c0_16, %c0_17, %c0_18] : memref<1x32x128xf32, #tpu.memory_space<vmem>>, vector<1x32x128xf32>
    %26 = vector.extract_strided_slice %25 {offsets = [0, 6, 0], sizes = [1, 16, 128], strides = [1, 1, 1]} : vector<1x32x128xf32> to vector<1x16x128xf32>
    %27 = vector.extract_strided_slice %25 {offsets = [0, 8, 0], sizes = [1, 16, 128], strides = [1, 1, 1]} : vector<1x32x128xf32> to vector<1x16x128xf32>
    %28 = vector.extract_strided_slice %25 {offsets = [0, 10, 0], sizes = [1, 16, 128], strides = [1, 1, 1]} : vector<1x32x128xf32> to vector<1x16x128xf32>
    %29 = tpu.concatenate %26, %27, %28 in 2 : vector<1x16x128xf32>, vector<1x16x128xf32>, vector<1x16x128xf32> -> vector<1x16x384xf32>
    %30 = vector.shape_cast %29 : vector<1x16x384xf32> to vector<16x384xf32>
    %c0_19 = arith.constant 0 : index
    %c0_20 = arith.constant 0 : index
    %31 = vector.load %arg3[%c0_19, %c0_20] : memref<384x128xf32, #tpu.memory_space<vmem>>, vector<384x128xf32>
    %cst_21 = arith.constant dense<0.000000e+00> : vector<16x128xf32>
    %32 = tpu.matmul %30, %31, %cst_21 {dimension_numbers = #tpu.dot_dimension_numbers<[1], [0], [0], [1], [0, 0, 1, 1], [], []>} : vector<16x384xf32>, vector<384x128xf32>, vector<16x128xf32> -> vector<16x128xf32>
    %33 = vector.broadcast %4 : vector<1x128xf32> to vector<16x128xf32>
    %34 = arith.mulf %32, %33 : vector<16x128xf32>
    %35 = vector.broadcast %5 : vector<1x128xf32> to vector<16x128xf32>
    %36 = arith.addf %34, %35 : vector<16x128xf32>
    %cst_22 = arith.constant 0.000000e+00 : f32
    %37 = vector.broadcast %cst_22 : f32 to vector<16x128xf32>
    %38 = arith.maximumf %36, %37 : vector<16x128xf32>
    %39 = vector.extract_strided_slice %0 {offsets = [0, 2, 0], sizes = [1, 16, 128], strides = [1, 1, 1]} : vector<1x24x128xf32> to vector<1x16x128xf32>
    %40 = vector.shape_cast %39 : vector<1x16x128xf32> to vector<16x128xf32>
    %c0_23 = arith.constant 0 : index
    %c0_24 = arith.constant 0 : index
    %41 = vector.load %arg4[%c0_23, %c0_24] : memref<128x128xf32, #tpu.memory_space<vmem>>, vector<128x128xf32>
    %cst_25 = arith.constant dense<0.000000e+00> : vector<16x128xf32>
    %42 = tpu.matmul %40, %41, %cst_25 {dimension_numbers = #tpu.dot_dimension_numbers<[1], [0], [0], [1], [0, 0, 1, 1], [], []>} : vector<16x128xf32>, vector<128x128xf32>, vector<16x128xf32> -> vector<16x128xf32>
    %43 = vector.extract_strided_slice %1 {offsets = [4, 0], sizes = [1, 128], strides = [1, 1]} : vector<5x128xf32> to vector<1x128xf32>
    %44 = vector.broadcast %43 : vector<1x128xf32> to vector<16x128xf32>
    %45 = arith.addf %42, %44 : vector<16x128xf32>
    %46 = arith.addf %38, %45 : vector<16x128xf32>
    %cst_26 = arith.constant 0.000000e+00 : f32
    %47 = vector.broadcast %cst_26 : f32 to vector<16x128xf32>
    %48 = arith.maximumf %46, %47 : vector<16x128xf32>
    %c0_27 = arith.constant 0 : index
    %c0_28 = arith.constant 0 : index
    %49 = vector.load %arg6[%c0_27, %c0_28] : memref<16x128xf32, #tpu.memory_space<vmem>>, vector<16x128xf32>
    tpu.vector_store %arg6[%c0_27, %c0_28], %48 {strides = array<i32>} : memref<16x128xf32, #tpu.memory_space<vmem>>, vector<16x128xf32>,
    return
  }
  func.func @transform_0(%arg0: i32) -> (i32, i32, i32) {
    %c0_i32 = arith.constant 0 : i32
    %c0_i32_0 = arith.constant 0 : i32
    %c0_i32_1 = arith.constant 0 : i32
    return %arg0, %c0_i32, %c0_i32_0 : i32, i32, i32
  }
  func.func @transform_1(%arg0: i32) -> (i32, i32) {
    %c0_i32 = arith.constant 0 : i32
    %c0_i32_0 = arith.constant 0 : i32
    %c0_i32_1 = arith.constant 0 : i32
    return %c0_i32, %c0_i32_0 : i32, i32
  }
  func.func @transform_2(%arg0: i32) -> (i32, i32) {
    %c0_i32 = arith.constant 0 : i32
    %c0_i32_0 = arith.constant 0 : i32
    %c0_i32_1 = arith.constant 0 : i32
    return %c0_i32, %c0_i32_0 : i32, i32
  }
  func.func @transform_3(%arg0: i32) -> (i32, i32) {
    %c0_i32 = arith.constant 0 : i32
    %c0_i32_0 = arith.constant 0 : i32
    %c0_i32_1 = arith.constant 0 : i32
    return %c0_i32, %c0_i32_0 : i32, i32
  }
  func.func @transform_4(%arg0: i32) -> (i32, i32) {
    %c0_i32 = arith.constant 0 : i32
    %c0_i32_0 = arith.constant 0 : i32
    %c0_i32_1 = arith.constant 0 : i32
    return %c0_i32, %c0_i32_0 : i32, i32
  }
  func.func @transform_5(%arg0: i32) -> (i32, i32) {
    %c0_i32 = arith.constant 0 : i32
    %c0_i32_0 = arith.constant 0 : i32
    return %arg0, %c0_i32 : i32, i32
  }
}

module attributes {stable_mosaic.version = 11 : i64} {
  func.func @_temporal_block_kernel(%arg0: i32, %arg1: memref<1x24x128xf32, #tpu.memory_space<vmem>>, %arg2: memref<384x128xf32, #tpu.memory_space<vmem>>, %arg3: memref<384x128xf32, #tpu.memory_space<vmem>>, %arg4: memref<128x128xf32, #tpu.memory_space<vmem>>, %arg5: memref<5x128xf32, #tpu.memory_space<vmem>>, %arg6: memref<16x128xf32, #tpu.memory_space<vmem>>, %arg7: memref<1x32x128xf32, #tpu.memory_space<vmem>>) attributes {dimension_semantics = [#tpu.dimension_semantics<parallel>], iteration_bounds = array<i64: 2>, scalar_prefetch = 0 : i64, scratch_operands = 1 : i64, tpu.core_type = #tpu.core_type<tc>, window_params = [{transform_indices = @transform_0, window_bounds = array<i64: 1, 24, 128>}, {pipeline_mode = #tpu.pipeline_mode<synchronous>, transform_indices = @transform_1, window_bounds = array<i64: 384, 128>}, {pipeline_mode = #tpu.pipeline_mode<synchronous>, transform_indices = @transform_2, window_bounds = array<i64: 384, 128>}, {pipeline_mode = #tpu.pipeline_mode<synchronous>, transform_indices = @transform_3, window_bounds = array<i64: 128, 128>}, {pipeline_mode = #tpu.pipeline_mode<synchronous>, transform_indices = @transform_4, window_bounds = array<i64: 5, 128>}, {transform_indices = @transform_5, window_bounds = array<i64: 16, 128>}]} {
    %c0 = arith.constant 0 : index
    %c0_0 = arith.constant 0 : index
    %c0_1 = arith.constant 0 : index
    %0 = vector.load %arg1[%c0, %c0_0, %c0_1] : memref<1x24x128xf32, #tpu.memory_space<vmem>>, vector<1x24x128xf32>
    %c0_2 = arith.constant 0 : index
    %c0_3 = arith.constant 0 : index
    %1 = vector.load %arg5[%c0_2, %c0_3] : memref<5x128xf32, #tpu.memory_space<vmem>>, vector<5x128xf32>
    %2 = vector.extract_strided_slice %1 {offsets = [0, 0], sizes = [1, 128], strides = [1, 1]} : vector<5x128xf32> to vector<1x128xf32>
    %3 = vector.extract_strided_slice %1 {offsets = [1, 0], sizes = [1, 128], strides = [1, 1]} : vector<5x128xf32> to vector<1x128xf32>
    %4 = vector.extract_strided_slice %1 {offsets = [2, 0], sizes = [1, 128], strides = [1, 1]} : vector<5x128xf32> to vector<1x128xf32>
    %5 = vector.extract_strided_slice %1 {offsets = [3, 0], sizes = [1, 128], strides = [1, 1]} : vector<5x128xf32> to vector<1x128xf32>
    %6 = vector.extract_strided_slice %0 {offsets = [0, 0, 0], sizes = [1, 16, 128], strides = [1, 1, 1]} : vector<1x24x128xf32> to vector<1x16x128xf32>
    %7 = vector.extract_strided_slice %0 {offsets = [0, 2, 0], sizes = [1, 16, 128], strides = [1, 1, 1]} : vector<1x24x128xf32> to vector<1x16x128xf32>
    %8 = vector.extract_strided_slice %0 {offsets = [0, 4, 0], sizes = [1, 16, 128], strides = [1, 1, 1]} : vector<1x24x128xf32> to vector<1x16x128xf32>
    %9 = tpu.concatenate %6, %7, %8 in 2 : vector<1x16x128xf32>, vector<1x16x128xf32>, vector<1x16x128xf32> -> vector<1x16x384xf32>
    %10 = vector.shape_cast %9 : vector<1x16x384xf32> to vector<16x384xf32>
    %c0_4 = arith.constant 0 : index
    %c0_5 = arith.constant 0 : index
    %11 = vector.load %arg2[%c0_4, %c0_5] : memref<384x128xf32, #tpu.memory_space<vmem>>, vector<384x128xf32>
    %cst = arith.constant dense<0.000000e+00> : vector<16x128xf32>
    %12 = tpu.matmul %10, %11, %cst {dimension_numbers = #tpu.dot_dimension_numbers<[1], [0], [0], [1], [0, 0, 1, 1], [], []>} : vector<16x384xf32>, vector<384x128xf32>, vector<16x128xf32> -> vector<16x128xf32>
    %13 = vector.broadcast %2 : vector<1x128xf32> to vector<16x128xf32>
    %14 = arith.mulf %12, %13 : vector<16x128xf32>
    %15 = vector.broadcast %3 : vector<1x128xf32> to vector<16x128xf32>
    %16 = arith.addf %14, %15 : vector<16x128xf32>
    %cst_6 = arith.constant 0.000000e+00 : f32
    %17 = vector.broadcast %cst_6 : f32 to vector<16x128xf32>
    %18 = arith.maximumf %16, %17 : vector<16x128xf32>
    %cst_7 = arith.constant 0.000000e+00 : f32
    %19 = vector.broadcast %cst_7 : f32 to vector<1x8x128xf32>
    %c0_8 = arith.constant 0 : index
    %c0_9 = arith.constant 0 : index
    %c0_10 = arith.constant 0 : index
    %20 = vector.load %arg7[%c0_8, %c0_9, %c0_10] : memref<1x32x128xf32, #tpu.memory_space<vmem>>, vector<1x8x128xf32>
    tpu.vector_store %arg7[%c0_8, %c0_9, %c0_10], %19 {strides = array<i32>} : memref<1x32x128xf32, #tpu.memory_space<vmem>>, vector<1x8x128xf32>,
    %cst_11 = arith.constant 0.000000e+00 : f32
    %21 = vector.broadcast %cst_11 : f32 to vector<1x8x128xf32>
    %c0_12 = arith.constant 0 : index
    %c24 = arith.constant 24 : index
    %c0_13 = arith.constant 0 : index
    %22 = vector.load %arg7[%c0_12, %c24, %c0_13] : memref<1x32x128xf32, #tpu.memory_space<vmem>>, vector<1x8x128xf32>
    tpu.vector_store %arg7[%c0_12, %c24, %c0_13], %21 {strides = array<i32>} : memref<1x32x128xf32, #tpu.memory_space<vmem>>, vector<1x8x128xf32>,
    %23 = vector.shape_cast %18 : vector<16x128xf32> to vector<1x16x128xf32>
    %c0_14 = arith.constant 0 : index
    %c8 = arith.constant 8 : index
    %c0_15 = arith.constant 0 : index
    %24 = vector.load %arg7[%c0_14, %c8, %c0_15] : memref<1x32x128xf32, #tpu.memory_space<vmem>>, vector<1x16x128xf32>
    tpu.vector_store %arg7[%c0_14, %c8, %c0_15], %23 {strides = array<i32>} : memref<1x32x128xf32, #tpu.memory_space<vmem>>, vector<1x16x128xf32>,
    %c0_16 = arith.constant 0 : index
    %c0_17 = arith.constant 0 : index
    %c0_18 = arith.constant 0 : index
    %25 = vector.load %arg7[%c0_16, %c0_17, %c0_18] : memref<1x32x128xf32, #tpu.memory_space<vmem>>, vector<1x32x128xf32>
    %26 = vector.extract_strided_slice %25 {offsets = [0, 6, 0], sizes = [1, 16, 128], strides = [1, 1, 1]} : vector<1x32x128xf32> to vector<1x16x128xf32>
    %27 = vector.extract_strided_slice %25 {offsets = [0, 8, 0], sizes = [1, 16, 128], strides = [1, 1, 1]} : vector<1x32x128xf32> to vector<1x16x128xf32>
    %28 = vector.extract_strided_slice %25 {offsets = [0, 10, 0], sizes = [1, 16, 128], strides = [1, 1, 1]} : vector<1x32x128xf32> to vector<1x16x128xf32>
    %29 = tpu.concatenate %26, %27, %28 in 2 : vector<1x16x128xf32>, vector<1x16x128xf32>, vector<1x16x128xf32> -> vector<1x16x384xf32>
    %30 = vector.shape_cast %29 : vector<1x16x384xf32> to vector<16x384xf32>
    %c0_19 = arith.constant 0 : index
    %c0_20 = arith.constant 0 : index
    %31 = vector.load %arg3[%c0_19, %c0_20] : memref<384x128xf32, #tpu.memory_space<vmem>>, vector<384x128xf32>
    %cst_21 = arith.constant dense<0.000000e+00> : vector<16x128xf32>
    %32 = tpu.matmul %30, %31, %cst_21 {dimension_numbers = #tpu.dot_dimension_numbers<[1], [0], [0], [1], [0, 0, 1, 1], [], []>} : vector<16x384xf32>, vector<384x128xf32>, vector<16x128xf32> -> vector<16x128xf32>
    %33 = vector.broadcast %4 : vector<1x128xf32> to vector<16x128xf32>
    %34 = arith.mulf %32, %33 : vector<16x128xf32>
    %35 = vector.broadcast %5 : vector<1x128xf32> to vector<16x128xf32>
    %36 = arith.addf %34, %35 : vector<16x128xf32>
    %cst_22 = arith.constant 0.000000e+00 : f32
    %37 = vector.broadcast %cst_22 : f32 to vector<16x128xf32>
    %38 = arith.maximumf %36, %37 : vector<16x128xf32>
    %39 = vector.extract_strided_slice %0 {offsets = [0, 2, 0], sizes = [1, 16, 128], strides = [1, 1, 1]} : vector<1x24x128xf32> to vector<1x16x128xf32>
    %40 = vector.shape_cast %39 : vector<1x16x128xf32> to vector<16x128xf32>
    %c0_23 = arith.constant 0 : index
    %c0_24 = arith.constant 0 : index
    %41 = vector.load %arg4[%c0_23, %c0_24] : memref<128x128xf32, #tpu.memory_space<vmem>>, vector<128x128xf32>
    %cst_25 = arith.constant dense<0.000000e+00> : vector<16x128xf32>
    %42 = tpu.matmul %40, %41, %cst_25 {dimension_numbers = #tpu.dot_dimension_numbers<[1], [0], [0], [1], [0, 0, 1, 1], [], []>} : vector<16x128xf32>, vector<128x128xf32>, vector<16x128xf32> -> vector<16x128xf32>
    %43 = vector.extract_strided_slice %1 {offsets = [4, 0], sizes = [1, 128], strides = [1, 1]} : vector<5x128xf32> to vector<1x128xf32>
    %44 = vector.broadcast %43 : vector<1x128xf32> to vector<16x128xf32>
    %45 = arith.addf %42, %44 : vector<16x128xf32>
    %46 = arith.addf %38, %45 : vector<16x128xf32>
    %cst_26 = arith.constant 0.000000e+00 : f32
    %47 = vector.broadcast %cst_26 : f32 to vector<16x128xf32>
    %48 = arith.maximumf %46, %47 : vector<16x128xf32>
    %c0_27 = arith.constant 0 : index
    %c0_28 = arith.constant 0 : index
    %49 = vector.load %arg6[%c0_27, %c0_28] : memref<16x128xf32, #tpu.memory_space<vmem>>, vector<16x128xf32>
    tpu.vector_store %arg6[%c0_27, %c0_28], %48 {strides = array<i32>} : memref<16x128xf32, #tpu.memory_space<vmem>>, vector<16x128xf32>,
    return
  }
  func.func @transform_0(%arg0: i32) -> (i32, i32, i32) {
    %c0_i32 = arith.constant 0 : i32
    %c0_i32_0 = arith.constant 0 : i32
    %c0_i32_1 = arith.constant 0 : i32
    return %arg0, %c0_i32, %c0_i32_0 : i32, i32, i32
  }
  func.func @transform_1(%arg0: i32) -> (i32, i32) {
    %c0_i32 = arith.constant 0 : i32
    %c0_i32_0 = arith.constant 0 : i32
    %c0_i32_1 = arith.constant 0 : i32
    return %c0_i32, %c0_i32_0 : i32, i32
  }
  func.func @transform_2(%arg0: i32) -> (i32, i32) {
    %c0_i32 = arith.constant 0 : i32
    %c0_i32_0 = arith.constant 0 : i32
    %c0_i32_1 = arith.constant 0 : i32
    return %c0_i32, %c0_i32_0 : i32, i32
  }
  func.func @transform_3(%arg0: i32) -> (i32, i32) {
    %c0_i32 = arith.constant 0 : i32
    %c0_i32_0 = arith.constant 0 : i32
    %c0_i32_1 = arith.constant 0 : i32
    return %c0_i32, %c0_i32_0 : i32, i32
  }
  func.func @transform_4(%arg0: i32) -> (i32, i32) {
    %c0_i32 = arith.constant 0 : i32
    %c0_i32_0 = arith.constant 0 : i32
    %c0_i32_1 = arith.constant 0 : i32
    return %c0_i32, %c0_i32_0 : i32, i32
  }
  func.func @transform_5(%arg0: i32) -> (i32, i32) {
    %c0_i32 = arith.constant 0 : i32
    %c0_i32_0 = arith.constant 0 : i32
    return %arg0, %c0_i32 : i32, i32
  }
}

</mosaic_0001>

<llo_original>
// kernel: tpu_custom_call.1
$region0: #{tpu_custom_call.1}
  #allocation0 [shape = 'u32[]', space=smem, size = 0x4, offset = 0x4, fixed_abs, tag = 'smem constant byte address 0x4 - core index']
  #allocation1 [shape = 'u32[144,128]{1,0:T(1,128)}', space=vmem, size = 0x12000, scoped, tag = 'internal scratch']
  #allocation2 [shape = 'f32[1,32,128]{2,1,0:T(8,128)}', space=vmem, size = 0x4000, scoped, tag = 'scratch operand']
  %s0 = inlined_call_operand.hbm [shape: f32[2,24,128], index: 0, kind: input, shape index: {}]
  %s1 = inlined_call_operand.hbm [shape: f32[384,128], index: 1, kind: input, shape index: {}]
  %s2 = inlined_call_operand.hbm [shape: f32[384,128], index: 2, kind: input, shape index: {}]
  %s3 = inlined_call_operand.hbm [shape: f32[128,128], index: 3, kind: input, shape index: {}]
  %s4 = inlined_call_operand.vmem [shape: f32[5,128], index: 4, kind: input, shape index: {}]
  %s5 = inlined_call_operand.hbm [shape: f32[32,128], index: 5, kind: output, shape index: {}]
  %s6 = sld [smem:[#allocation0]]
  $region69: #{tpu_custom_call.1} parent=0
    _
  %s8 = ssub.s32 1, %s6
  %s9 = scalar_select 0, %s8, %s6
  $region1: #{tpu_custom_call.1} parent=0
    #allocation3 [shape = 'u8[24576]{0}', space=vmem, size = 0x6000, scoped, tag = 'input window, operand 0']
    #allocation4 [shape = 's32[2]{0}', space=sflag, size = 0x8, scoped, tag = 'scoped memory for tpu_custom_call.1']
    #allocation5 [shape = 's32[2]{0}', space=sflag, size = 0x8, scoped, tag = 'scoped memory for tpu_custom_call.1']
    #allocation6 [shape = 'u8[196608]{0}', space=vmem, size = 0x30000, scoped, tag = 'input window, operand 1, single buffered']
    #allocation7 [shape = 's32[1]{0}', space=sflag, size = 0x4, scoped, tag = 'scoped memory for tpu_custom_call.1']
    #allocation8 [shape = 'u8[196608]{0}', space=vmem, size = 0x30000, scoped, tag = 'input window, operand 2, single buffered']
    #allocation9 [shape = 'u8[65536]{0}', space=vmem, size = 0x10000, scoped, tag = 'input window, operand 3, single buffered']
    #allocation10 [shape = 's32[1]{0}', space=sflag, size = 0x4, scoped, tag = 'scoped memory for tpu_custom_call.1']
    #allocation11 [shape = 'u8[16384]{0}', space=vmem, size = 0x4000, scoped, tag = 'output window, operand 0']
    %10 = vsyncpa [#allocation4], 0
    %s11 = scalar_lea.sflag [#allocation4], 1
    %12 = vsyncpa %s11, 0
    %13 = vsyncpa [#allocation7], 0
    %14 = vsyncpa [#allocation10], 0
    %15 = vsyncpa [#allocation5], 0
    %s16 = scalar_lea.sflag [#allocation5], 1
    %17 = vsyncpa %s16, 0
    loop: start=0, step=1, limit=4
    $region2: #{tpu_custom_call.1} parent=1 // loop_pre_header
      _
    $region3: #{tpu_custom_call.1} parent=1 // loop_header
      %s19 = sphi 0, %s23
      %p20 = scmp.ge.s32.totalorder %s19, 4
      %s29 = sphi 0, %s31
      %s32 = sphi 0, %s29
      %s33 = sphi 0, %s32
      %s49 = sphi 0, %s33
      %s53 = sphi 0, %s53
      %s55 = sphi 0, %s53
      %s56 = sphi 0, %s55
      %s70 = sphi 0, %s56
      %s74 = sphi 0, %s74
      %s76 = sphi 0, %s74
      %s77 = sphi 0, %s76
      %s91 = sphi 0, %s77
      %s95 = sphi 0, %s95
      %s97 = sphi 0, %s95
      %s98 = sphi 0, %s97
      %s112 = sphi 0, %s98
      %s116 = sphi 0, %s116
      %s118 = sphi 0, %s116
      %s119 = sphi 0, %s118
      %s133 = sphi 0, %s119
      %s139 = sphi 0, %s141
      %s142 = sphi 0, %s139
      %s143 = sphi 0, %s142
      %s159 = sphi 0, %s143
    $region4: #{tpu_custom_call.1} parent=1 // loop_header_branch
      %22 = sbr.rel (%p20) target = $region8
    $region5: #{tpu_custom_call.1} parent=1 // loop_body
      %s24 = ssub.s32 %s19, 1
      %s25 = ssub.s32 %s19, 2
      %s26 = sadd.s32 %s19, 1
      %s27 = ssub.s32 %s19, %s26
      %p28 = scmp.eq.s32.totalorder %s27, 0
      %s30 = sadd.s32 %s29, 1
      %s31 = scalar_select %p28, %s29, %s30
      %p34 = pneg %p28
      %p35 = scmp.eq.s32.totalorder %s19, 1
      %p36 = por %p34, %p35
      %p37 = scmp.ne.s32.totalorder %s29, %s32
      %p38 = scmp.eq.s32.totalorder %s19, 0
      %p39 = por %p37, %p38
      %p40 = scmp.ne.s32.totalorder %s29, %s32
      %p41 = scmp.eq.s32.totalorder %s24, 1
      %p42 = por %p40, %p41
      %p43 = scmp.ne.s32.totalorder %s32, %s33
      %p44 = scmp.eq.s32.totalorder %s24, 0
      %p45 = por %p43, %p44
      %p46 = scmp.ne.s32.totalorder %s32, %s33
      %p47 = scmp.eq.s32.totalorder %s25, 1
      %p48 = por %p46, %p47
      %p50 = scmp.ne.s32.totalorder %s33, %s49
      %p51 = scmp.eq.s32.totalorder %s25, 0
      %p52 = por %p50, %p51
      %s54 = sadd.s32 %s53, 1
      %p57 = scmp.eq.s32.totalorder %s19, 1
      %p58 = scmp.ne.s32.totalorder %s53, %s55
      %p59 = scmp.eq.s32.totalorder %s19, 0
      %p60 = por %p58, %p59
      %p61 = scmp.ne.s32.totalorder %s53, %s55
      %p62 = scmp.eq.s32.totalorder %s24, 1
      %p63 = por %p61, %p62
      %p64 = scmp.ne.s32.totalorder %s55, %s56
      %p65 = scmp.eq.s32.totalorder %s24, 0
      %p66 = por %p64, %p65
      %p67 = scmp.ne.s32.totalorder %s55, %s56
      %p68 = scmp.eq.s32.totalorder %s25, 1
      %p69 = por %p67, %p68
      %p71 = scmp.ne.s32.totalorder %s56, %s70
      %p72 = scmp.eq.s32.totalorder %s25, 0
      %p73 = por %p71, %p72
      %s75 = sadd.s32 %s74, 1
      %p78 = scmp.eq.s32.totalorder %s19, 1
      %p79 = scmp.ne.s32.totalorder %s74, %s76
      %p80 = scmp.eq.s32.totalorder %s19, 0
      %p81 = por %p79, %p80
      %p82 = scmp.ne.s32.totalorder %s74, %s76
      %p83 = scmp.eq.s32.totalorder %s24, 1
      %p84 = por %p82, %p83
      %p85 = scmp.ne.s32.totalorder %s76, %s77
      %p86 = scmp.eq.s32.totalorder %s24, 0
      %p87 = por %p85, %p86
      %p88 = scmp.ne.s32.totalorder %s76, %s77
      %p89 = scmp.eq.s32.totalorder %s25, 1
      %p90 = por %p88, %p89
      %p92 = scmp.ne.s32.totalorder %s77, %s91
      %p93 = scmp.eq.s32.totalorder %s25, 0
      %p94 = por %p92, %p93
      %s96 = sadd.s32 %s95, 1
      %p99 = scmp.eq.s32.totalorder %s19, 1
      %p100 = scmp.ne.s32.totalorder %s95, %s97
      %p101 = scmp.eq.s32.totalorder %s19, 0
      %p102 = por %p100, %p101
      %p103 = scmp.ne.s32.totalorder %s95, %s97
      %p104 = scmp.eq.s32.totalorder %s24, 1
      %p105 = por %p103, %p104
      %p106 = scmp.ne.s32.totalorder %s97, %s98
      %p107 = scmp.eq.s32.totalorder %s24, 0
      %p108 = por %p106, %p107
      %p109 = scmp.ne.s32.totalorder %s97, %s98
      %p110 = scmp.eq.s32.totalorder %s25, 1
      %p111 = por %p109, %p110
      %p113 = scmp.ne.s32.totalorder %s98, %s112
      %p114 = scmp.eq.s32.totalorder %s25, 0
      %p115 = por %p113, %p114
      %s117 = sadd.s32 %s116, 1
      %p120 = scmp.eq.s32.totalorder %s19, 1
      %p121 = scmp.ne.s32.totalorder %s116, %s118
      %p122 = scmp.eq.s32.totalorder %s19, 0
      %p123 = por %p121, %p122
      %p124 = scmp.ne.s32.totalorder %s116, %s118
      %p125 = scmp.eq.s32.totalorder %s24, 1
      %p126 = por %p124, %p125
      %p127 = scmp.ne.s32.totalorder %s118, %s119
      %p128 = scmp.eq.s32.totalorder %s24, 0
      %p129 = por %p127, %p128
      %p130 = scmp.ne.s32.totalorder %s118, %s119
      %p131 = scmp.eq.s32.totalorder %s25, 1
      %p132 = por %p130, %p131
      %p134 = scmp.ne.s32.totalorder %s119, %s133
      %p135 = scmp.eq.s32.totalorder %s25, 0
      %p136 = por %p134, %p135
      %s137 = ssub.s32 %s19, %s26
      %p138 = scmp.eq.s32.totalorder %s137, 0
      %s140 = sadd.s32 %s139, 1
      %s141 = scalar_select %p138, %s139, %s140
      %p144 = pneg %p138
      %p145 = scmp.eq.s32.totalorder %s19, 1
      %p146 = por %p144, %p145
      %p147 = scmp.ne.s32.totalorder %s139, %s142
      %p148 = scmp.eq.s32.totalorder %s19, 0
      %p149 = por %p147, %p148
      %p150 = scmp.ne.s32.totalorder %s139, %s142
      %p151 = scmp.eq.s32.totalorder %s24, 1
      %p152 = por %p150, %p151
      %p153 = scmp.ne.s32.totalorder %s142, %s143
      %p154 = scmp.eq.s32.totalorder %s24, 0
      %p155 = por %p153, %p154
      %p156 = scmp.ne.s32.totalorder %s142, %s143
      %p157 = scmp.eq.s32.totalorder %s25, 1
      %p158 = por %p156, %p157
      %p160 = scmp.ne.s32.totalorder %s143, %s159
      %p161 = scmp.eq.s32.totalorder %s25, 0
      %p162 = por %p160, %p161
      %p163 = scmp.le.s32.totalorder 1, %s19
      %p164 = scmp.lt.s32.totalorder %s19, 3
      %p165 = pnand %p163, %p164
      %p166 = pneg %p165
      // Predicated region
      $region9: #{tpu_custom_call.1} parent=5 // pred_check
        _
      $region10: #{tpu_custom_call.1} parent=5 // pred_check_branch
        %168 = sbr.rel (%p165) target = $region12
      $region11: #{tpu_custom_call.1} parent=5 // pred_region
        %s169 = ssub.s32 %s19, 1
        // Predicated region
        $region13: #{tpu_custom_call.1} parent=11 // pred_check
          %p170 = pneg %p66
        $region14: #{tpu_custom_call.1} parent=11 // pred_check_branch
          %172 = sbr.rel (%p170) target = $region16
        $region15: #{tpu_custom_call.1} parent=11 // pred_region
          %s174 = ssub.s32 6144, 6144
          %175 = vsyncadd [#allocation7], %s174
          %s176 = sshll.u32 [#allocation6], 4
          %s177 = int_to_ptr.vmem [resolvable:$true] %s176
          %182 = dma.hbm_to_vmem [thread:$0]  %s1, 6144, %s177, [#allocation7], 128, 128, 8
        $region16: #{tpu_custom_call.1} parent=11 // pred_fallthru
          _
        // Predicated region
        $region17: #{tpu_custom_call.1} parent=11 // pred_check
          %p183 = pneg %p87
        $region18: #{tpu_custom_call.1} parent=11 // pred_check_branch
          %185 = sbr.rel (%p183) target = $region20
        $region19: #{tpu_custom_call.1} parent=11 // pred_region
          %s187 = ssub.s32 6144, 6144
          %188 = vsyncadd [#allocation7], %s187
          %s189 = sshll.u32 [#allocation8], 4
          %s190 = int_to_ptr.vmem [resolvable:$true] %s189
          %195 = dma.hbm_to_vmem [thread:$0]  %s2, 6144, %s190, [#allocation7], 128, 128, 8
        $region20: #{tpu_custom_call.1} parent=11 // pred_fallthru
          _
        // Predicated region
        $region21: #{tpu_custom_call.1} parent=11 // pred_check
          %p196 = pneg %p108
        $region22: #{tpu_custom_call.1} parent=11 // pred_check_branch
          %198 = sbr.rel (%p196) target = $region24
        $region23: #{tpu_custom_call.1} parent=11 // pred_region
          %s200 = ssub.s32 2048, 2048
          %201 = vsyncadd [#allocation10], %s200
          %s202 = sshll.u32 [#allocation9], 4
          %s203 = int_to_ptr.vmem [resolvable:$true] %s202
          %208 = dma.hbm_to_vmem [thread:$0]  %s3, 2048, %s203, [#allocation10], 128, 128, 8
        $region24: #{tpu_custom_call.1} parent=11 // pred_fallthru
          _
        // Predicated region
        $region25: #{tpu_custom_call.1} parent=11 // pred_check
          %p209 = pneg %p129
        $region26: #{tpu_custom_call.1} parent=11 // pred_check_branch
          %211 = sbr.rel (%p209) target = $region28
        $region27: #{tpu_custom_call.1} parent=11 // pred_region
          _
        $region28: #{tpu_custom_call.1} parent=11 // pred_fallthru
          _
      $region12: #{tpu_custom_call.1} parent=5 // pred_fallthru
        _
      %p212 = scmp.lt.s32.totalorder %s19, 2
      // Predicated region
      $region29: #{tpu_custom_call.1} parent=5 // pred_check
        %p213 = pneg %p212
      $region30: #{tpu_custom_call.1} parent=5 // pred_check_branch
        %215 = sbr.rel (%p213) target = $region32
      $region31: #{tpu_custom_call.1} parent=5 // pred_region
        // Predicated region
        $region33: #{tpu_custom_call.1} parent=31 // pred_check
          %p216 = pneg %p39
        $region34: #{tpu_custom_call.1} parent=31 // pred_check_branch
          %218 = sbr.rel (%p216) target = $region36
        $region35: #{tpu_custom_call.1} parent=31 // pred_region
          %s219 = sand.u32 %s29, 1
          %s220 = scalar_lea.sflag [#allocation4], %s219
          %s221 = sand.u32 %s29, 1
          %s222 = smul.addr %s221, 24
          %s223 = scalar_lea.vmem [#allocation3], %s222
          %s225 = ssub.s32 384, 384
          %226 = vsyncadd %s220, %s225
          %s227 = smul.addr %s19, 3
          %s228 = smul.addr %s227, 128
          %s229 = scalar_lea.hbm %s0, %s228
          %s230 = sshll.u32 %s223, 4
          %s231 = int_to_ptr.vmem [resolvable:$true] %s230
          %236 = dma.hbm_to_vmem [thread:$0]  %s229, 384, %s231, %s220, 128, 128, 8
        $region36: #{tpu_custom_call.1} parent=31 // pred_fallthru
          _
      $region32: #{tpu_custom_call.1} parent=5 // pred_fallthru
        _
      %p237 = scmp.le.s32.totalorder 1, %s19
      %p238 = scmp.lt.s32.totalorder %s19, 3
      %p239 = pnand %p237, %p238
      %p240 = pneg %p239
      // Predicated region
      $region37: #{tpu_custom_call.1} parent=5 // pred_check
        _
      $region38: #{tpu_custom_call.1} parent=5 // pred_check_branch
        %242 = sbr.rel (%p239) target = $region40
      $region39: #{tpu_custom_call.1} parent=5 // pred_region
        %s243 = ssub.s32 %s19, 1
        %s244 = sand.u32 %s32, 1
        %s245 = scalar_lea.sflag [#allocation4], %s244
        %s246 = sand.u32 %s32, 1
        %s247 = smul.addr %s246, 24
        %s248 = scalar_lea.vmem [#allocation3], %s247
        // Predicated region
        $region41: #{tpu_custom_call.1} parent=39 // pred_check
          %p249 = pneg %p45
        $region42: #{tpu_custom_call.1} parent=39 // pred_check_branch
          %251 = sbr.rel (%p249) target = $region44
        $region43: #{tpu_custom_call.1} parent=39 // pred_region
          %252 = dma.done %s245, 384
        $region44: #{tpu_custom_call.1} parent=39 // pred_fallthru
          _
        // Predicated region
        $region45: #{tpu_custom_call.1} parent=39 // pred_check
          %p253 = pneg %p66
        $region46: #{tpu_custom_call.1} parent=39 // pred_check_branch
          %255 = sbr.rel (%p253) target = $region48
        $region47: #{tpu_custom_call.1} parent=39 // pred_region
          %256 = dma.done [#allocation7], 6144
        $region48: #{tpu_custom_call.1} parent=39 // pred_fallthru
          _
        // Predicated region
        $region49: #{tpu_custom_call.1} parent=39 // pred_check
          %p257 = pneg %p87
        $region50: #{tpu_custom_call.1} parent=39 // pred_check_branch
          %259 = sbr.rel (%p257) target = $region52
        $region51: #{tpu_custom_call.1} parent=39 // pred_region
          %260 = dma.done [#allocation7], 6144
        $region52: #{tpu_custom_call.1} parent=39 // pred_fallthru
          _
        // Predicated region
        $region53: #{tpu_custom_call.1} parent=39 // pred_check
          %p261 = pneg %p108
        $region54: #{tpu_custom_call.1} parent=39 // pred_check_branch
          %263 = sbr.rel (%p261) target = $region56
        $region55: #{tpu_custom_call.1} parent=39 // pred_region
          %264 = dma.done [#allocation10], 2048
        $region56: #{tpu_custom_call.1} parent=39 // pred_fallthru
          _
        %s265 = sand.u32 %s32, 1
        %s266 = scalar_lea.sflag [#allocation4], %s265
        %s267 = sand.u32 %s32, 1
        %s268 = smul.addr %s267, 24
        %s269 = scalar_lea.vmem [#allocation3], %s268
        %p270 = pneg %p45
        %p271 = pneg %p42
        %p272 = pneg %p66
        %p273 = pneg %p63
        %p274 = pneg %p87
        %p275 = pneg %p84
        %p276 = pneg %p108
        %p277 = pneg %p105
        %p278 = pneg %p129
        %p279 = pneg %p126
        %p280 = pneg %p155
        %p281 = pneg %p152
        %s282 = sand.u32 %s142, 1
        %s283 = scalar_lea.sflag [#allocation5], %s282
        %s284 = sand.u32 %s142, 1
        %s285 = smul.addr %s284, 16
        %s286 = scalar_lea.vmem [#allocation11], %s285
        %s287 = smul.u32 2, %s24
        %v288 = vld [vmem:[%s248] sm:$0xff]
        %v289 = vld [vmem:[%s248 + $0x8] sm:$0xff]
        %v290 = vld [vmem:[%s248 + $0x10] sm:$0xff]
        %v291 = vld [vmem:[%s4] sm:$0x1f]
        %vm295 = vcmask 1045504
        %v296 = vrot.slane %v288, 2
        %v297 = vrot.slane %v289, 2
        %v298 = vsel %vm295, %v296, %v297
        %v299 = vrot.slane %v290, 2
        %v300 = vsel %vm295, %v297, %v299
        %vm303 = vcmask 1043456
        %v304 = vrot.slane %v288, 4
        %v305 = vrot.slane %v289, 4
        %v306 = vsel %vm303, %v304, %v305
        %v307 = vrot.slane %v290, 4
        %v308 = vsel %vm303, %v305, %v307
        %v311 = vld [vmem:[#allocation6] sm:$0xff]
        %v312 = vld [vmem:[#allocation6 + $0x8] sm:$0xff]
        %v313 = vld [vmem:[#allocation6 + $0x10] sm:$0xff]
        %v314 = vld [vmem:[#allocation6 + $0x18] sm:$0xff]
        %v315 = vld [vmem:[#allocation6 + $0x20] sm:$0xff]
        %v316 = vld [vmem:[#allocation6 + $0x28] sm:$0xff]
        %v317 = vld [vmem:[#allocation6 + $0x30] sm:$0xff]
        %v318 = vld [vmem:[#allocation6 + $0x38] sm:$0xff]
        %v319 = vld [vmem:[#allocation6 + $0x40] sm:$0xff]
        %v320 = vld [vmem:[#allocation6 + $0x48] sm:$0xff]
        %v321 = vld [vmem:[#allocation6 + $0x50] sm:$0xff]
        %v322 = vld [vmem:[#allocation6 + $0x58] sm:$0xff]
        %v323 = vld [vmem:[#allocation6 + $0x60] sm:$0xff]
        %v324 = vld [vmem:[#allocation6 + $0x68] sm:$0xff]
        %v325 = vld [vmem:[#allocation6 + $0x70] sm:$0xff]
        %v326 = vld [vmem:[#allocation6 + $0x78] sm:$0xff]
        %v327 = vld [vmem:[#allocation6 + $0x80] sm:$0xff]
        %v328 = vld [vmem:[#allocation6 + $0x88] sm:$0xff]
        %v329 = vld [vmem:[#allocation6 + $0x90] sm:$0xff]
        %v330 = vld [vmem:[#allocation6 + $0x98] sm:$0xff]
        %v331 = vld [vmem:[#allocation6 + $0xa0] sm:$0xff]
        %v332 = vld [vmem:[#allocation6 + $0xa8] sm:$0xff]
        %v333 = vld [vmem:[#allocation6 + $0xb0] sm:$0xff]
        %v334 = vld [vmem:[#allocation6 + $0xb8] sm:$0xff]
        %v335 = vld [vmem:[#allocation6 + $0xc0] sm:$0xff]
        %v336 = vld [vmem:[#allocation6 + $0xc8] sm:$0xff]
        %v337 = vld [vmem:[#allocation6 + $0xd0] sm:$0xff]
        %v338 = vld [vmem:[#allocation6 + $0xd8] sm:$0xff]
        %v339 = vld [vmem:[#allocation6 + $0xe0] sm:$0xff]
        %v340 = vld [vmem:[#allocation6 + $0xe8] sm:$0xff]
        %v341 = vld [vmem:[#allocation6 + $0xf0] sm:$0xff]
        %v342 = vld [vmem:[#allocation6 + $0xf8] sm:$0xff]
        %v343 = vld [vmem:[#allocation6 + $0x100] sm:$0xff]
        %v344 = vld [vmem:[#allocation6 + $0x108] sm:$0xff]
        %v345 = vld [vmem:[#allocation6 + $0x110] sm:$0xff]
        %v346 = vld [vmem:[#allocation6 + $0x118] sm:$0xff]
        %v347 = vld [vmem:[#allocation6 + $0x120] sm:$0xff]
        %v348 = vld [vmem:[#allocation6 + $0x128] sm:$0xff]
        %v349 = vld [vmem:[#allocation6 + $0x130] sm:$0xff]
        %v350 = vld [vmem:[#allocation6 + $0x138] sm:$0xff]
        %v351 = vld [vmem:[#allocation6 + $0x140] sm:$0xff]
        %v352 = vld [vmem:[#allocation6 + $0x148] sm:$0xff]
        %v353 = vld [vmem:[#allocation6 + $0x150] sm:$0xff]
        %v354 = vld [vmem:[#allocation6 + $0x158] sm:$0xff]
        %v355 = vld [vmem:[#allocation6 + $0x160] sm:$0xff]
        %v356 = vld [vmem:[#allocation6 + $0x168] sm:$0xff]
        %v357 = vld [vmem:[#allocation6 + $0x170] sm:$0xff]
        %v358 = vld [vmem:[#allocation6 + $0x178] sm:$0xff]
        %359 = vmatprep.subr.mxu0 0.0
        %360 = vmatpush1.msra.mxu0 %v311
        %361 = vmatprep.subr.mxu0 0.0
        %362 = vmatpush1.msra.mxu0 %v312
        %363 = vmatprep.subr.mxu0 0.0
        %364 = vmatpush1.msra.mxu0 %v313
        %365 = vmatprep.subr.mxu0 0.0
        %366 = vmatpush1.msra.mxu0 %v314
        %367 = vmatprep.subr.mxu0 0.0
        %368 = vmatpush1.msra.mxu0 %v315
        %369 = vmatprep.subr.mxu0 0.0
        %370 = vmatpush1.msra.mxu0 %v316
        %371 = vmatprep.subr.mxu0 0.0
        %372 = vmatpush1.msra.mxu0 %v317
        %373 = vmatprep.subr.mxu0 0.0
        %374 = vmatpush1.msra.mxu0 %v318
        %375 = vmatprep.subr.mxu0 0.0
        %376 = vmatpush1.msra.mxu0 %v319
        %377 = vmatprep.subr.mxu0 0.0
        %378 = vmatpush1.msra.mxu0 %v320
        %379 = vmatprep.subr.mxu0 0.0
        %380 = vmatpush1.msra.mxu0 %v321
        %381 = vmatprep.subr.mxu0 0.0
        %382 = vmatpush1.msra.mxu0 %v322
        %383 = vmatprep.subr.mxu0 0.0
        %384 = vmatpush1.msra.mxu0 %v323
        %385 = vmatprep.subr.mxu0 0.0
        %386 = vmatpush1.msra.mxu0 %v324
        %387 = vmatprep.subr.mxu0 0.0
        %388 = vmatpush1.msra.mxu0 %v325
        %389 = vmatprep.subr.mxu0 0.0
        %390 = vmatpush1.msra.mxu0 %v326
        %391 = vmatprep.subr.mxu0 0.0
        %392 = vmatpush1.msra.mxu0 %v327
        %393 = vmatprep.subr.mxu0 0.0
        %394 = vmatpush1.msra.mxu0 %v328
        %395 = vmatprep.subr.mxu0 0.0
        %396 = vmatpush1.msra.mxu0 %v329
        %397 = vmatprep.subr.mxu0 0.0
        %398 = vmatpush1.msra.mxu0 %v330
        %399 = vmatprep.subr.mxu0 0.0
        %400 = vmatpush1.msra.mxu0 %v331
        %401 = vmatprep.subr.mxu0 0.0
        %402 = vmatpush1.msra.mxu0 %v332
        %403 = vmatprep.subr.mxu0 0.0
        %404 = vmatpush1.msra.mxu0 %v333
        %405 = vmatprep.subr.mxu0 0.0
        %406 = vmatpush1.msra.mxu0 %v334
        %407 = vmatprep.subr.mxu0 0.0
        %408 = vmatpush1.msra.mxu0 %v335
        %409 = vmatprep.subr.mxu0 0.0
        %410 = vmatpush1.msra.mxu0 %v336
        %411 = vmatprep.subr.mxu0 0.0
        %412 = vmatpush1.msra.mxu0 %v337
        %413 = vmatprep.subr.mxu0 0.0
        %414 = vmatpush1.msra.mxu0 %v338
        %415 = vmatprep.subr.mxu0 0.0
        %416 = vmatpush1.msra.mxu0 %v339
        %417 = vmatprep.subr.mxu0 0.0
        %418 = vmatpush1.msra.mxu0 %v340
        %419 = vmatprep.subr.mxu0 0.0
        %420 = vmatpush1.msra.mxu0 %v341
        %421 = vmatprep.subr.mxu0 0.0
        %422 = vmatpush1.msra.mxu0 %v342
        %423 = vmatprep.mubr.f32.mxu0 %v298
        %424 = vmatmul.mubr.f32.gmra.mrb[0].mxu0 %v288
        %v425 = vpop.f32.mrb[0].mxu0
        %v426 = vadd.f32 0.0, %v425
        %v427 = vpop.f32.mrb[0].mxu0
        %428 = vmatprep.mubr.f32.mxu0 %v300
        %429 = vmatmul.mubr.f32.gmra.mrb[0].mxu0 %v289
        %v430 = vpop.f32.mrb[0].mxu0
        %v431 = vadd.f32 0.0, %v430
        %v432 = vpop.f32.mrb[0].mxu0
        %433 = vdwg.mxu0
        %434 = vmatprep.subr.mxu0 0.0
        %435 = vmatpush1.msra.mxu0 %v343
        %436 = vmatprep.subr.mxu0 0.0
        %437 = vmatpush1.msra.mxu0 %v344
        %438 = vmatprep.subr.mxu0 0.0
        %439 = vmatpush1.msra.mxu0 %v345
        %440 = vmatprep.subr.mxu0 0.0
        %441 = vmatpush1.msra.mxu0 %v346
        %442 = vmatprep.subr.mxu0 0.0
        %443 = vmatpush1.msra.mxu0 %v347
        %444 = vmatprep.subr.mxu0 0.0
        %445 = vmatpush1.msra.mxu0 %v348
        %446 = vmatprep.subr.mxu0 0.0
        %447 = vmatpush1.msra.mxu0 %v349
        %448 = vmatprep.subr.mxu0 0.0
        %449 = vmatpush1.msra.mxu0 %v350
        %450 = vmatprep.subr.mxu0 0.0
        %451 = vmatpush1.msra.mxu0 %v351
        %452 = vmatprep.subr.mxu0 0.0
        %453 = vmatpush1.msra.mxu0 %v352
        %454 = vmatprep.subr.mxu0 0.0
        %455 = vmatpush1.msra.mxu0 %v353
        %456 = vmatprep.subr.mxu0 0.0
        %457 = vmatpush1.msra.mxu0 %v354
        %458 = vmatprep.subr.mxu0 0.0
        %459 = vmatpush1.msra.mxu0 %v355
        %460 = vmatprep.subr.mxu0 0.0
        %461 = vmatpush1.msra.mxu0 %v356
        %462 = vmatprep.subr.mxu0 0.0
        %463 = vmatpush1.msra.mxu0 %v357
        %464 = vmatprep.subr.mxu0 0.0
        %465 = vmatpush1.msra.mxu0 %v358
        %466 = vmatprep.subr.mxu0 0.0
        %467 = vmatpush1.msra.mxu0 0.0
        %468 = vmatprep.subr.mxu0 0.0
        %469 = vmatpush1.msra.mxu0 0.0
        %470 = vmatprep.subr.mxu0 0.0
        %471 = vmatpush1.msra.mxu0 0.0
        %472 = vmatprep.subr.mxu0 0.0
        %473 = vmatpush1.msra.mxu0 0.0
        %474 = vmatprep.subr.mxu0 0.0
        %475 = vmatpush1.msra.mxu0 0.0
        %476 = vmatprep.subr.mxu0 0.0
        %477 = vmatpush1.msra.mxu0 0.0
        %478 = vmatprep.subr.mxu0 0.0
        %479 = vmatpush1.msra.mxu0 0.0
        %480 = vmatprep.subr.mxu0 0.0
        %481 = vmatpush1.msra.mxu0 0.0
        %482 = vmatprep.subr.mxu0 0.0
        %483 = vmatpush1.msra.mxu0 0.0
        %484 = vmatprep.subr.mxu0 0.0
        %485 = vmatpush1.msra.mxu0 0.0
        %486 = vmatprep.subr.mxu0 0.0
        %487 = vmatpush1.msra.mxu0 0.0
        %488 = vmatprep.subr.mxu0 0.0
        %489 = vmatpush1.msra.mxu0 0.0
        %490 = vmatprep.subr.mxu0 0.0
        %491 = vmatpush1.msra.mxu0 0.0
        %492 = vmatprep.subr.mxu0 0.0
        %493 = vmatpush1.msra.mxu0 0.0
        %494 = vmatprep.subr.mxu0 0.0
        %495 = vmatpush1.msra.mxu0 0.0
        %496 = vmatprep.subr.mxu0 0.0
        %497 = vmatpush1.msra.mxu0 0.0
        %498 = vmatprep.mubr.f32.mxu0 0.0
        %499 = vmatmul.mubr.f32.gmra.mrb[0].mxu0 %v306
        %v500 = vpop.f32.mrb[0].mxu0
        %v501 = vadd.f32 %v426, %v500
        %v502 = vpop.f32.mrb[0].mxu0
        %503 = vmatprep.mubr.f32.mxu0 0.0
        %504 = vmatmul.mubr.f32.gmra.mrb[0].mxu0 %v308
        %v505 = vpop.f32.mrb[0].mxu0
        %v506 = vadd.f32 %v431, %v505
        %v507 = vpop.f32.mrb[0].mxu0
        %508 = vdwg.mxu0
        %v509 = vlaneseq
        %v510 = vshrl.u32 %v509, 7
        %v511 = vsub.s32 0, %v510
        %v512 = vrot.slane %v291, %v511
        %v513 = vmul.f32 %v501, %v512
        %v514 = vmul.f32 %v506, %v512
        %v515 = vlaneseq
        %v516 = vshrl.u32 %v515, 7
        %v517 = vsub.s32 1, %v516
        %v518 = vrot.slane %v291, %v517
        %v519 = vadd.f32 %v513, %v518
        %v520 = vadd.f32 %v514, %v518
        %v521 = vmax.f32 %v519, 0.0
        %v522 = vmax.f32 %v520, 0.0
        %523 = vst [vmem:[#allocation2] sm:$0xff] 0.0
        %524 = vst [vmem:[#allocation2 + $0x18] sm:$0xff] 0.0
        %525 = vst [vmem:[#allocation2 + $0x8] sm:$0xff] %v521
        %526 = vst [vmem:[#allocation2 + $0x10] sm:$0xff] %v522
        %v527 = vld [vmem:[#allocation2] sm:$0xff]
        %v528 = vld [vmem:[#allocation2 + $0x8] sm:$0xff]
        %v529 = vld [vmem:[#allocation2 + $0x10] sm:$0xff]
        %v530 = vld [vmem:[#allocation2 + $0x18] sm:$0xff]
        %v533 = vrot.slane %v528, 2
        %v534 = vrot.slane %v529, 2
        %v535 = vsel %vm295, %v533, %v534
        %v537 = vrot.slane %v528, 4
        %v538 = vrot.slane %v529, 4
        %v539 = vsel %vm303, %v537, %v538
        %v540 = vrot.slane %v530, 4
        %v541 = vsel %vm303, %v538, %v540
        %v542 = vld [vmem:[#allocation8] sm:$0xff]
        %v543 = vld [vmem:[#allocation8 + $0x8] sm:$0xff]
        %v544 = vld [vmem:[#allocation8 + $0x10] sm:$0xff]
        %v545 = vld [vmem:[#allocation8 + $0x18] sm:$0xff]
        %v546 = vld [vmem:[#allocation8 + $0x20] sm:$0xff]
        %v547 = vld [vmem:[#allocation8 + $0x28] sm:$0xff]
        %v548 = vld [vmem:[#allocation8 + $0x30] sm:$0xff]
        %v549 = vld [vmem:[#allocation8 + $0x38] sm:$0xff]
        %v550 = vld [vmem:[#allocation8 + $0x40] sm:$0xff]
        %v551 = vld [vmem:[#allocation8 + $0x48] sm:$0xff]
        %v552 = vld [vmem:[#allocation8 + $0x50] sm:$0xff]
        %v553 = vld [vmem:[#allocation8 + $0x58] sm:$0xff]
        %v554 = vld [vmem:[#allocation8 + $0x60] sm:$0xff]
        %v555 = vld [vmem:[#allocation8 + $0x68] sm:$0xff]
        %v556 = vld [vmem:[#allocation8 + $0x70] sm:$0xff]
        %v557 = vld [vmem:[#allocation8 + $0x78] sm:$0xff]
        %v558 = vld [vmem:[#allocation8 + $0x80] sm:$0xff]
        %v559 = vld [vmem:[#allocation8 + $0x88] sm:$0xff]
        %v560 = vld [vmem:[#allocation8 + $0x90] sm:$0xff]
        %v561 = vld [vmem:[#allocation8 + $0x98] sm:$0xff]
        %v562 = vld [vmem:[#allocation8 + $0xa0] sm:$0xff]
        %v563 = vld [vmem:[#allocation8 + $0xa8] sm:$0xff]
        %v564 = vld [vmem:[#allocation8 + $0xb0] sm:$0xff]
        %v565 = vld [vmem:[#allocation8 + $0xb8] sm:$0xff]
        %v566 = vld [vmem:[#allocation8 + $0xc0] sm:$0xff]
        %v567 = vld [vmem:[#allocation8 + $0xc8] sm:$0xff]
        %v568 = vld [vmem:[#allocation8 + $0xd0] sm:$0xff]
        %v569 = vld [vmem:[#allocation8 + $0xd8] sm:$0xff]
        %v570 = vld [vmem:[#allocation8 + $0xe0] sm:$0xff]
        %v571 = vld [vmem:[#allocation8 + $0xe8] sm:$0xff]
        %v572 = vld [vmem:[#allocation8 + $0xf0] sm:$0xff]
        %v573 = vld [vmem:[#allocation8 + $0xf8] sm:$0xff]
        %v574 = vld [vmem:[#allocation8 + $0x100] sm:$0xff]
        %v575 = vld [vmem:[#allocation8 + $0x108] sm:$0xff]
        %v576 = vld [vmem:[#allocation8 + $0x110] sm:$0xff]
        %v577 = vld [vmem:[#allocation8 + $0x118] sm:$0xff]
        %v578 = vld [vmem:[#allocation8 + $0x120] sm:$0xff]
        %v579 = vld [vmem:[#allocation8 + $0x128] sm:$0xff]
        %v580 = vld [vmem:[#allocation8 + $0x130] sm:$0xff]
        %v581 = vld [vmem:[#allocation8 + $0x138] sm:$0xff]
        %v582 = vld [vmem:[#allocation8 + $0x140] sm:$0xff]
        %v583 = vld [vmem:[#allocation8 + $0x148] sm:$0xff]
        %v584 = vld [vmem:[#allocation8 + $0x150] sm:$0xff]
        %v585 = vld [vmem:[#allocation8 + $0x158] sm:$0xff]
        %v586 = vld [vmem:[#allocation8 + $0x160] sm:$0xff]
        %v587 = vld [vmem:[#allocation8 + $0x168] sm:$0xff]
        %v588 = vld [vmem:[#allocation8 + $0x170] sm:$0xff]
        %v589 = vld [vmem:[#allocation8 + $0x178] sm:$0xff]
        %vm591 = vcmask 1041408
        %v592 = vrot.slane %v527, 6
        %v593 = vrot.slane %v528, 6
        %v594 = vsel %vm591, %v592, %v593
        %v595 = vrot.slane %v533, 6
        %v596 = vrot.slane %v535, 6
        %v597 = vsel %vm591, %v595, %v596
        %v598 = vrot.slane %v537, 6
        %v599 = vrot.slane %v539, 6
        %v600 = vsel %vm591, %v598, %v599
        %v601 = vrot.slane %v529, 6
        %v602 = vsel %vm591, %v593, %v601
        %v603 = vrot.slane %v534, 6
        %v604 = vsel %vm591, %v596, %v603
        %v605 = vrot.slane %v541, 6
        %v606 = vsel %vm591, %v599, %v605
        %613 = vmatprep.subr.mxu0 0.0
        %614 = vmatpush1.msra.mxu0 %v542
        %615 = vmatprep.subr.mxu0 0.0
        %616 = vmatpush1.msra.mxu0 %v543
        %617 = vmatprep.subr.mxu0 0.0
        %618 = vmatpush1.msra.mxu0 %v544
        %619 = vmatprep.subr.mxu0 0.0
        %620 = vmatpush1.msra.mxu0 %v545
        %621 = vmatprep.subr.mxu0 0.0
        %622 = vmatpush1.msra.mxu0 %v546
        %623 = vmatprep.subr.mxu0 0.0
        %624 = vmatpush1.msra.mxu0 %v547
        %625 = vmatprep.subr.mxu0 0.0
        %626 = vmatpush1.msra.mxu0 %v548
        %627 = vmatprep.subr.mxu0 0.0
        %628 = vmatpush1.msra.mxu0 %v549
        %629 = vmatprep.subr.mxu0 0.0
        %630 = vmatpush1.msra.mxu0 %v550
        %631 = vmatprep.subr.mxu0 0.0
        %632 = vmatpush1.msra.mxu0 %v551
        %633 = vmatprep.subr.mxu0 0.0
        %634 = vmatpush1.msra.mxu0 %v552
        %635 = vmatprep.subr.mxu0 0.0
        %636 = vmatpush1.msra.mxu0 %v553
        %637 = vmatprep.subr.mxu0 0.0
        %638 = vmatpush1.msra.mxu0 %v554
        %639 = vmatprep.subr.mxu0 0.0
        %640 = vmatpush1.msra.mxu0 %v555
        %641 = vmatprep.subr.mxu0 0.0
        %642 = vmatpush1.msra.mxu0 %v556
        %643 = vmatprep.subr.mxu0 0.0
        %644 = vmatpush1.msra.mxu0 %v557
        %645 = vmatprep.subr.mxu0 0.0
        %646 = vmatpush1.msra.mxu0 %v558
        %647 = vmatprep.subr.mxu0 0.0
        %648 = vmatpush1.msra.mxu0 %v559
        %649 = vmatprep.subr.mxu0 0.0
        %650 = vmatpush1.msra.mxu0 %v560
        %651 = vmatprep.subr.mxu0 0.0
        %652 = vmatpush1.msra.mxu0 %v561
        %653 = vmatprep.subr.mxu0 0.0
        %654 = vmatpush1.msra.mxu0 %v562
        %655 = vmatprep.subr.mxu0 0.0
        %656 = vmatpush1.msra.mxu0 %v563
        %657 = vmatprep.subr.mxu0 0.0
        %658 = vmatpush1.msra.mxu0 %v564
        %659 = vmatprep.subr.mxu0 0.0
        %660 = vmatpush1.msra.mxu0 %v565
        %661 = vmatprep.subr.mxu0 0.0
        %662 = vmatpush1.msra.mxu0 %v566
        %663 = vmatprep.subr.mxu0 0.0
        %664 = vmatpush1.msra.mxu0 %v567
        %665 = vmatprep.subr.mxu0 0.0
        %666 = vmatpush1.msra.mxu0 %v568
        %667 = vmatprep.subr.mxu0 0.0
        %668 = vmatpush1.msra.mxu0 %v569
        %669 = vmatprep.subr.mxu0 0.0
        %670 = vmatpush1.msra.mxu0 %v570
        %671 = vmatprep.subr.mxu0 0.0
        %672 = vmatpush1.msra.mxu0 %v571
        %673 = vmatprep.subr.mxu0 0.0
        %674 = vmatpush1.msra.mxu0 %v572
        %675 = vmatprep.subr.mxu0 0.0
        %676 = vmatpush1.msra.mxu0 %v573
        %677 = vmatprep.mubr.f32.mxu0 %v597
        %678 = vmatmul.mubr.f32.gmra.mrb[0].mxu0 %v594
        %v679 = vpop.f32.mrb[0].mxu0
        %v680 = vadd.f32 0.0, %v679
        %v681 = vpop.f32.mrb[0].mxu0
        %682 = vmatprep.mubr.f32.mxu0 %v604
        %683 = vmatmul.mubr.f32.gmra.mrb[0].mxu0 %v602
        %v684 = vpop.f32.mrb[0].mxu0
        %v685 = vadd.f32 0.0, %v684
        %v686 = vpop.f32.mrb[0].mxu0
        %687 = vdwg.mxu0
        %688 = vmatprep.subr.mxu0 0.0
        %689 = vmatpush1.msra.mxu0 %v574
        %690 = vmatprep.subr.mxu0 0.0
        %691 = vmatpush1.msra.mxu0 %v575
        %692 = vmatprep.subr.mxu0 0.0
        %693 = vmatpush1.msra.mxu0 %v576
        %694 = vmatprep.subr.mxu0 0.0
        %695 = vmatpush1.msra.mxu0 %v577
        %696 = vmatprep.subr.mxu0 0.0
        %697 = vmatpush1.msra.mxu0 %v578
        %698 = vmatprep.subr.mxu0 0.0
        %699 = vmatpush1.msra.mxu0 %v579
        %700 = vmatprep.subr.mxu0 0.0
        %701 = vmatpush1.msra.mxu0 %v580
        %702 = vmatprep.subr.mxu0 0.0
        %703 = vmatpush1.msra.mxu0 %v581
        %704 = vmatprep.subr.mxu0 0.0
        %705 = vmatpush1.msra.mxu0 %v582
        %706 = vmatprep.subr.mxu0 0.0
        %707 = vmatpush1.msra.mxu0 %v583
        %708 = vmatprep.subr.mxu0 0.0
        %709 = vmatpush1.msra.mxu0 %v584
        %710 = vmatprep.subr.mxu0 0.0
        %711 = vmatpush1.msra.mxu0 %v585
        %712 = vmatprep.subr.mxu0 0.0
        %713 = vmatpush1.msra.mxu0 %v586
        %714 = vmatprep.subr.mxu0 0.0
        %715 = vmatpush1.msra.mxu0 %v587
        %716 = vmatprep.subr.mxu0 0.0
        %717 = vmatpush1.msra.mxu0 %v588
        %718 = vmatprep.subr.mxu0 0.0
        %719 = vmatpush1.msra.mxu0 %v589
        %720 = vmatprep.subr.mxu0 0.0
        %721 = vmatpush1.msra.mxu0 0.0
        %722 = vmatprep.subr.mxu0 0.0
        %723 = vmatpush1.msra.mxu0 0.0
        %724 = vmatprep.subr.mxu0 0.0
        %725 = vmatpush1.msra.mxu0 0.0
        %726 = vmatprep.subr.mxu0 0.0
        %727 = vmatpush1.msra.mxu0 0.0
        %728 = vmatprep.subr.mxu0 0.0
        %729 = vmatpush1.msra.mxu0 0.0
        %730 = vmatprep.subr.mxu0 0.0
        %731 = vmatpush1.msra.mxu0 0.0
        %732 = vmatprep.subr.mxu0 0.0
        %733 = vmatpush1.msra.mxu0 0.0
        %734 = vmatprep.subr.mxu0 0.0
        %735 = vmatpush1.msra.mxu0 0.0
        %736 = vmatprep.subr.mxu0 0.0
        %737 = vmatpush1.msra.mxu0 0.0
        %738 = vmatprep.subr.mxu0 0.0
        %739 = vmatpush1.msra.mxu0 0.0
        %740 = vmatprep.subr.mxu0 0.0
        %741 = vmatpush1.msra.mxu0 0.0
        %742 = vmatprep.subr.mxu0 0.0
        %743 = vmatpush1.msra.mxu0 0.0
        %744 = vmatprep.subr.mxu0 0.0
        %745 = vmatpush1.msra.mxu0 0.0
        %746 = vmatprep.subr.mxu0 0.0
        %747 = vmatpush1.msra.mxu0 0.0
        %748 = vmatprep.subr.mxu0 0.0
        %749 = vmatpush1.msra.mxu0 0.0
        %750 = vmatprep.subr.mxu0 0.0
        %751 = vmatpush1.msra.mxu0 0.0
        %752 = vmatprep.mubr.f32.mxu0 0.0
        %753 = vmatmul.mubr.f32.gmra.mrb[0].mxu0 %v600
        %v754 = vpop.f32.mrb[0].mxu0
        %v755 = vadd.f32 %v680, %v754
        %v756 = vpop.f32.mrb[0].mxu0
        %757 = vmatprep.mubr.f32.mxu0 0.0
        %758 = vmatmul.mubr.f32.gmra.mrb[0].mxu0 %v606
        %v759 = vpop.f32.mrb[0].mxu0
        %v760 = vadd.f32 %v685, %v759
        %v761 = vpop.f32.mrb[0].mxu0
        %762 = vdwg.mxu0
        %v763 = vlaneseq
        %v764 = vshrl.u32 %v763, 7
        %v765 = vsub.s32 2, %v764
        %v766 = vrot.slane %v291, %v765
        %v767 = vmul.f32 %v755, %v766
        %v768 = vmul.f32 %v760, %v766
        %v769 = vlaneseq
        %v770 = vshrl.u32 %v769, 7
        %v771 = vsub.s32 3, %v770
        %v772 = vrot.slane %v291, %v771
        %v773 = vadd.f32 %v767, %v772
        %v774 = vadd.f32 %v768, %v772
        %v775 = vmax.f32 %v773, 0.0
        %v776 = vmax.f32 %v774, 0.0
        %v777 = vld [vmem:[#allocation9] sm:$0xff]
        %v778 = vld [vmem:[#allocation9 + $0x8] sm:$0xff]
        %v779 = vld [vmem:[#allocation9 + $0x10] sm:$0xff]
        %v780 = vld [vmem:[#allocation9 + $0x18] sm:$0xff]
        %v781 = vld [vmem:[#allocation9 + $0x20] sm:$0xff]
        %v782 = vld [vmem:[#allocation9 + $0x28] sm:$0xff]
        %v783 = vld [vmem:[#allocation9 + $0x30] sm:$0xff]
        %v784 = vld [vmem:[#allocation9 + $0x38] sm:$0xff]
        %v785 = vld [vmem:[#allocation9 + $0x40] sm:$0xff]
        %v786 = vld [vmem:[#allocation9 + $0x48] sm:$0xff]
        %v787 = vld [vmem:[#allocation9 + $0x50] sm:$0xff]
        %v788 = vld [vmem:[#allocation9 + $0x58] sm:$0xff]
        %v789 = vld [vmem:[#allocation9 + $0x60] sm:$0xff]
        %v790 = vld [vmem:[#allocation9 + $0x68] sm:$0xff]
        %v791 = vld [vmem:[#allocation9 + $0x70] sm:$0xff]
        %v792 = vld [vmem:[#allocation9 + $0x78] sm:$0xff]
        %v793 = vlaneseq
        %v794 = vshrl.u32 %v793, 7
        %v795 = vsub.s32 4, %v794
        %v796 = vrot.slane %v291, %v795
        %797 = vmatprep.subr.mxu0 0.0
        %798 = vmatpush1.msra.mxu0 %v777
        %799 = vmatprep.subr.mxu0 0.0
        %800 = vmatpush1.msra.mxu0 %v778
        %801 = vmatprep.subr.mxu0 0.0
        %802 = vmatpush1.msra.mxu0 %v779
        %803 = vmatprep.subr.mxu0 0.0
        %804 = vmatpush1.msra.mxu0 %v780
        %805 = vmatprep.subr.mxu0 0.0
        %806 = vmatpush1.msra.mxu0 %v781
        %807 = vmatprep.subr.mxu0 0.0
        %808 = vmatpush1.msra.mxu0 %v782
        %809 = vmatprep.subr.mxu0 0.0
        %810 = vmatpush1.msra.mxu0 %v783
        %811 = vmatprep.subr.mxu0 0.0
        %812 = vmatpush1.msra.mxu0 %v784
        %813 = vmatprep.subr.mxu0 0.0
        %814 = vmatpush1.msra.mxu0 %v785
        %815 = vmatprep.subr.mxu0 0.0
        %816 = vmatpush1.msra.mxu0 %v786
        %817 = vmatprep.subr.mxu0 0.0
        %818 = vmatpush1.msra.mxu0 %v787
        %819 = vmatprep.subr.mxu0 0.0
        %820 = vmatpush1.msra.mxu0 %v788
        %821 = vmatprep.subr.mxu0 0.0
        %822 = vmatpush1.msra.mxu0 %v789
        %823 = vmatprep.subr.mxu0 0.0
        %824 = vmatpush1.msra.mxu0 %v790
        %825 = vmatprep.subr.mxu0 0.0
        %826 = vmatpush1.msra.mxu0 %v791
        %827 = vmatprep.subr.mxu0 0.0
        %828 = vmatpush1.msra.mxu0 %v792
        %829 = vmatprep.subr.mxu0 0.0
        %830 = vmatpush1.msra.mxu0 0.0
        %831 = vmatprep.subr.mxu0 0.0
        %832 = vmatpush1.msra.mxu0 0.0
        %833 = vmatprep.subr.mxu0 0.0
        %834 = vmatpush1.msra.mxu0 0.0
        %835 = vmatprep.subr.mxu0 0.0
        %836 = vmatpush1.msra.mxu0 0.0
        %837 = vmatprep.subr.mxu0 0.0
        %838 = vmatpush1.msra.mxu0 0.0
        %839 = vmatprep.subr.mxu0 0.0
        %840 = vmatpush1.msra.mxu0 0.0
        %841 = vmatprep.subr.mxu0 0.0
        %842 = vmatpush1.msra.mxu0 0.0
        %843 = vmatprep.subr.mxu0 0.0
        %844 = vmatpush1.msra.mxu0 0.0
        %845 = vmatprep.subr.mxu0 0.0
        %846 = vmatpush1.msra.mxu0 0.0
        %847 = vmatprep.subr.mxu0 0.0
        %848 = vmatpush1.msra.mxu0 0.0
        %849 = vmatprep.subr.mxu0 0.0
        %850 = vmatpush1.msra.mxu0 0.0
        %851 = vmatprep.subr.mxu0 0.0
        %852 = vmatpush1.msra.mxu0 0.0
        %853 = vmatprep.subr.mxu0 0.0
        %854 = vmatpush1.msra.mxu0 0.0
        %855 = vmatprep.subr.mxu0 0.0
        %856 = vmatpush1.msra.mxu0 0.0
        %857 = vmatprep.subr.mxu0 0.0
        %858 = vmatpush1.msra.mxu0 0.0
        %859 = vmatprep.subr.mxu0 0.0
        %860 = vmatpush1.msra.mxu0 0.0
        %861 = vmatprep.mubr.f32.mxu0 0.0
        %862 = vmatmul.mubr.f32.gmra.mrb[0].mxu0 %v298
        %v863 = vpop.f32.mrb[0].mxu0
        %v864 = vadd.f32 %v796, %v863
        %v865 = vpop.f32.mrb[0].mxu0
        %866 = vmatprep.mubr.f32.mxu0 0.0
        %867 = vmatmul.mubr.f32.gmra.mrb[0].mxu0 %v300
        %v868 = vpop.f32.mrb[0].mxu0
        %v869 = vadd.f32 %v796, %v868
        %v870 = vpop.f32.mrb[0].mxu0
        %871 = vdwg.mxu0
        %v872 = vadd.f32 %v775, %v864
        %v873 = vadd.f32 %v776, %v869
        %v874 = vmax.f32 %v872, 0.0
        %v875 = vmax.f32 %v873, 0.0
        %876 = vst [vmem:[%s286] sm:$0xff] %v874
        %877 = vst [vmem:[%s286 + $0x8] sm:$0xff] %v875
        %s878 = sand.u32 %s142, 1
        %s879 = scalar_lea.sflag [#allocation5], %s878
        %s880 = sand.u32 %s142, 1
        %s881 = smul.addr %s880, 16
        %s882 = scalar_lea.vmem [#allocation11], %s881
        // Predicated region
        $region57: #{tpu_custom_call.1} parent=39 // pred_check
          %p883 = pneg %p152
        $region58: #{tpu_custom_call.1} parent=39 // pred_check_branch
          %885 = sbr.rel (%p883) target = $region60
        $region59: #{tpu_custom_call.1} parent=39 // pred_region
          %s886 = smul.u32 2, %s24
          %s888 = ssub.s32 256, 256
          %889 = vsyncadd %s879, %s888
          %s890 = smul.addr %s886, 128
          %s891 = scalar_lea.hbm %s5, %s890
          %s892 = sshll.u32 %s882, 4
          %s893 = int_to_ptr.vmem [resolvable:$true] %s892
          %898 = dma.vmem_to_hbm [thread:$0]  %s893, 256, %s891, %s879, 128, 128, 8
        $region60: #{tpu_custom_call.1} parent=39 // pred_fallthru
          _
      $region40: #{tpu_custom_call.1} parent=5 // pred_fallthru
        _
      %p899 = scmp.le.s32.totalorder 2, %s19
      // Predicated region
      $region61: #{tpu_custom_call.1} parent=5 // pred_check
        %p900 = pneg %p899
      $region62: #{tpu_custom_call.1} parent=5 // pred_check_branch
        %902 = sbr.rel (%p900) target = $region64
      $region63: #{tpu_custom_call.1} parent=5 // pred_region
        %s903 = ssub.s32 %s19, 2
        // Predicated region
        $region65: #{tpu_custom_call.1} parent=63 // pred_check
          %p904 = pneg %p158
        $region66: #{tpu_custom_call.1} parent=63 // pred_check_branch
          %906 = sbr.rel (%p904) target = $region68
        $region67: #{tpu_custom_call.1} parent=63 // pred_region
          %s907 = sand.u32 %s143, 1
          %s908 = scalar_lea.sflag [#allocation5], %s907
          %s909 = sand.u32 %s143, 1
          %s910 = smul.addr %s909, 16
          %s911 = scalar_lea.vmem [#allocation11], %s910
          %912 = dma.done %s908, 256
        $region68: #{tpu_custom_call.1} parent=63 // pred_fallthru
          _
      $region64: #{tpu_custom_call.1} parent=5 // pred_fallthru
        _
    $region6: #{tpu_custom_call.1} parent=1 // loop_footer
      %s23 = sadd.s32 1, %s19
    $region7: #{tpu_custom_call.1} parent=1 // loop_footer_branch
      %18 = sbr.rel target = $region3
    $region8: #{tpu_custom_call.1} parent=1 // loop_exit
      _
    %913 = vsyncpa [#allocation4], 1
    %s914 = scalar_lea.sflag [#allocation4], 1
    %915 = vsyncpa %s914, 1
    %916 = vsyncpa [#allocation7], 1
    %917 = vsyncpa [#allocation10], 1
    %918 = vsyncpa [#allocation5], 1
    %s919 = scalar_lea.sflag [#allocation5], 1
    %920 = vsyncpa %s919, 1

// kernel: tpu_custom_call.1
$region0: #{tpu_custom_call.1}
  #allocation0 [shape = 'u32[]', space=smem, size = 0x4, offset = 0x4, fixed_abs, tag = 'smem constant byte address 0x4 - core index']
  #allocation1 [shape = 'u32[144,128]{1,0:T(1,128)}', space=vmem, size = 0x12000, scoped, tag = 'internal scratch']
  #allocation2 [shape = 'f32[1,32,128]{2,1,0:T(8,128)}', space=vmem, size = 0x4000, scoped, tag = 'scratch operand']
  %s0 = inlined_call_operand.hbm [shape: f32[2,24,128], index: 0, kind: input, shape index: {}]
  %s1 = inlined_call_operand.hbm [shape: f32[384,128], index: 1, kind: input, shape index: {}]
  %s2 = inlined_call_operand.hbm [shape: f32[384,128], index: 2, kind: input, shape index: {}]
  %s3 = inlined_call_operand.hbm [shape: f32[128,128], index: 3, kind: input, shape index: {}]
  %s4 = inlined_call_operand.vmem [shape: f32[5,128], index: 4, kind: input, shape index: {}]
  %s5 = inlined_call_operand.hbm [shape: f32[32,128], index: 5, kind: output, shape index: {}]
  %s6 = sld [smem:[#allocation0]]
  $region69: #{tpu_custom_call.1} parent=0
    _
  %s8 = ssub.s32 1, %s6
  %s9 = scalar_select 0, %s8, %s6
  $region1: #{tpu_custom_call.1} parent=0
    #allocation3 [shape = 'u8[24576]{0}', space=vmem, size = 0x6000, scoped, tag = 'input window, operand 0']
    #allocation4 [shape = 's32[2]{0}', space=sflag, size = 0x8, scoped, tag = 'scoped memory for tpu_custom_call.1']
    #allocation5 [shape = 's32[2]{0}', space=sflag, size = 0x8, scoped, tag = 'scoped memory for tpu_custom_call.1']
    #allocation6 [shape = 'u8[196608]{0}', space=vmem, size = 0x30000, scoped, tag = 'input window, operand 1, single buffered']
    #allocation7 [shape = 's32[1]{0}', space=sflag, size = 0x4, scoped, tag = 'scoped memory for tpu_custom_call.1']
    #allocation8 [shape = 'u8[196608]{0}', space=vmem, size = 0x30000, scoped, tag = 'input window, operand 2, single buffered']
    #allocation9 [shape = 'u8[65536]{0}', space=vmem, size = 0x10000, scoped, tag = 'input window, operand 3, single buffered']
    #allocation10 [shape = 's32[1]{0}', space=sflag, size = 0x4, scoped, tag = 'scoped memory for tpu_custom_call.1']
    #allocation11 [shape = 'u8[16384]{0}', space=vmem, size = 0x4000, scoped, tag = 'output window, operand 0']
    %10 = vsyncpa [#allocation4], 0
    %s11 = scalar_lea.sflag [#allocation4], 1
    %12 = vsyncpa %s11, 0
    %13 = vsyncpa [#allocation7], 0
    %14 = vsyncpa [#allocation10], 0
    %15 = vsyncpa [#allocation5], 0
    %s16 = scalar_lea.sflag [#allocation5], 1
    %17 = vsyncpa %s16, 0
    loop: start=0, step=1, limit=4
    $region2: #{tpu_custom_call.1} parent=1 // loop_pre_header
      _
    $region3: #{tpu_custom_call.1} parent=1 // loop_header
      %s19 = sphi 0, %s23
      %p20 = scmp.ge.s32.totalorder %s19, 4
      %s29 = sphi 0, %s31
      %s32 = sphi 0, %s29
      %s33 = sphi 0, %s32
      %s49 = sphi 0, %s33
      %s53 = sphi 0, %s53
      %s55 = sphi 0, %s53
      %s56 = sphi 0, %s55
      %s70 = sphi 0, %s56
      %s74 = sphi 0, %s74
      %s76 = sphi 0, %s74
      %s77 = sphi 0, %s76
      %s91 = sphi 0, %s77
      %s95 = sphi 0, %s95
      %s97 = sphi 0, %s95
      %s98 = sphi 0, %s97
      %s112 = sphi 0, %s98
      %s116 = sphi 0, %s116
      %s118 = sphi 0, %s116
      %s119 = sphi 0, %s118
      %s133 = sphi 0, %s119
      %s139 = sphi 0, %s141
      %s142 = sphi 0, %s139
      %s143 = sphi 0, %s142
      %s159 = sphi 0, %s143
    $region4: #{tpu_custom_call.1} parent=1 // loop_header_branch
      %22 = sbr.rel (%p20) target = $region8
    $region5: #{tpu_custom_call.1} parent=1 // loop_body
      %s24 = ssub.s32 %s19, 1
      %s25 = ssub.s32 %s19, 2
      %s26 = sadd.s32 %s19, 1
      %s27 = ssub.s32 %s19, %s26
      %p28 = scmp.eq.s32.totalorder %s27, 0
      %s30 = sadd.s32 %s29, 1
      %s31 = scalar_select %p28, %s29, %s30
      %p34 = pneg %p28
      %p35 = scmp.eq.s32.totalorder %s19, 1
      %p36 = por %p34, %p35
      %p37 = scmp.ne.s32.totalorder %s29, %s32
      %p38 = scmp.eq.s32.totalorder %s19, 0
      %p39 = por %p37, %p38
      %p40 = scmp.ne.s32.totalorder %s29, %s32
      %p41 = scmp.eq.s32.totalorder %s24, 1
      %p42 = por %p40, %p41
      %p43 = scmp.ne.s32.totalorder %s32, %s33
      %p44 = scmp.eq.s32.totalorder %s24, 0
      %p45 = por %p43, %p44
      %p46 = scmp.ne.s32.totalorder %s32, %s33
      %p47 = scmp.eq.s32.totalorder %s25, 1
      %p48 = por %p46, %p47
      %p50 = scmp.ne.s32.totalorder %s33, %s49
      %p51 = scmp.eq.s32.totalorder %s25, 0
      %p52 = por %p50, %p51
      %s54 = sadd.s32 %s53, 1
      %p57 = scmp.eq.s32.totalorder %s19, 1
      %p58 = scmp.ne.s32.totalorder %s53, %s55
      %p59 = scmp.eq.s32.totalorder %s19, 0
      %p60 = por %p58, %p59
      %p61 = scmp.ne.s32.totalorder %s53, %s55
      %p62 = scmp.eq.s32.totalorder %s24, 1
      %p63 = por %p61, %p62
      %p64 = scmp.ne.s32.totalorder %s55, %s56
      %p65 = scmp.eq.s32.totalorder %s24, 0
      %p66 = por %p64, %p65
      %p67 = scmp.ne.s32.totalorder %s55, %s56
      %p68 = scmp.eq.s32.totalorder %s25, 1
      %p69 = por %p67, %p68
      %p71 = scmp.ne.s32.totalorder %s56, %s70
      %p72 = scmp.eq.s32.totalorder %s25, 0
      %p73 = por %p71, %p72
      %s75 = sadd.s32 %s74, 1
      %p78 = scmp.eq.s32.totalorder %s19, 1
      %p79 = scmp.ne.s32.totalorder %s74, %s76
      %p80 = scmp.eq.s32.totalorder %s19, 0
      %p81 = por %p79, %p80
      %p82 = scmp.ne.s32.totalorder %s74, %s76
      %p83 = scmp.eq.s32.totalorder %s24, 1
      %p84 = por %p82, %p83
      %p85 = scmp.ne.s32.totalorder %s76, %s77
      %p86 = scmp.eq.s32.totalorder %s24, 0
      %p87 = por %p85, %p86
      %p88 = scmp.ne.s32.totalorder %s76, %s77
      %p89 = scmp.eq.s32.totalorder %s25, 1
      %p90 = por %p88, %p89
      %p92 = scmp.ne.s32.totalorder %s77, %s91
      %p93 = scmp.eq.s32.totalorder %s25, 0
      %p94 = por %p92, %p93
      %s96 = sadd.s32 %s95, 1
      %p99 = scmp.eq.s32.totalorder %s19, 1
      %p100 = scmp.ne.s32.totalorder %s95, %s97
      %p101 = scmp.eq.s32.totalorder %s19, 0
      %p102 = por %p100, %p101
      %p103 = scmp.ne.s32.totalorder %s95, %s97
      %p104 = scmp.eq.s32.totalorder %s24, 1
      %p105 = por %p103, %p104
      %p106 = scmp.ne.s32.totalorder %s97, %s98
      %p107 = scmp.eq.s32.totalorder %s24, 0
      %p108 = por %p106, %p107
      %p109 = scmp.ne.s32.totalorder %s97, %s98
      %p110 = scmp.eq.s32.totalorder %s25, 1
      %p111 = por %p109, %p110
      %p113 = scmp.ne.s32.totalorder %s98, %s112
      %p114 = scmp.eq.s32.totalorder %s25, 0
      %p115 = por %p113, %p114
      %s117 = sadd.s32 %s116, 1
      %p120 = scmp.eq.s32.totalorder %s19, 1
      %p121 = scmp.ne.s32.totalorder %s116, %s118
      %p122 = scmp.eq.s32.totalorder %s19, 0
      %p123 = por %p121, %p122
      %p124 = scmp.ne.s32.totalorder %s116, %s118
      %p125 = scmp.eq.s32.totalorder %s24, 1
      %p126 = por %p124, %p125
      %p127 = scmp.ne.s32.totalorder %s118, %s119
      %p128 = scmp.eq.s32.totalorder %s24, 0
      %p129 = por %p127, %p128
      %p130 = scmp.ne.s32.totalorder %s118, %s119
      %p131 = scmp.eq.s32.totalorder %s25, 1
      %p132 = por %p130, %p131
      %p134 = scmp.ne.s32.totalorder %s119, %s133
      %p135 = scmp.eq.s32.totalorder %s25, 0
      %p136 = por %p134, %p135
      %s137 = ssub.s32 %s19, %s26
      %p138 = scmp.eq.s32.totalorder %s137, 0
      %s140 = sadd.s32 %s139, 1
      %s141 = scalar_select %p138, %s139, %s140
      %p144 = pneg %p138
      %p145 = scmp.eq.s32.totalorder %s19, 1
      %p146 = por %p144, %p145
      %p147 = scmp.ne.s32.totalorder %s139, %s142
      %p148 = scmp.eq.s32.totalorder %s19, 0
      %p149 = por %p147, %p148
      %p150 = scmp.ne.s32.totalorder %s139, %s142
      %p151 = scmp.eq.s32.totalorder %s24, 1
      %p152 = por %p150, %p151
      %p153 = scmp.ne.s32.totalorder %s142, %s143
      %p154 = scmp.eq.s32.totalorder %s24, 0
      %p155 = por %p153, %p154
      %p156 = scmp.ne.s32.totalorder %s142, %s143
      %p157 = scmp.eq.s32.totalorder %s25, 1
      %p158 = por %p156, %p157
      %p160 = scmp.ne.s32.totalorder %s143, %s159
      %p161 = scmp.eq.s32.totalorder %s25, 0
      %p162 = por %p160, %p161
      %p163 = scmp.le.s32.totalorder 1, %s19
      %p164 = scmp.lt.s32.totalorder %s19, 3
      %p165 = pnand %p163, %p164
      %p166 = pneg %p165
      // Predicated region
      $region9: #{tpu_custom_call.1} parent=5 // pred_check
        _
      $region10: #{tpu_custom_call.1} parent=5 // pred_check_branch
        %168 = sbr.rel (%p165) target = $region12
      $region11: #{tpu_custom_call.1} parent=5 // pred_region
        %s169 = ssub.s32 %s19, 1
        // Predicated region
        $region13: #{tpu_custom_call.1} parent=11 // pred_check
          %p170 = pneg %p66
        $region14: #{tpu_custom_call.1} parent=11 // pred_check_branch
          %172 = sbr.rel (%p170) target = $region16
        $region15: #{tpu_custom_call.1} parent=11 // pred_region
          %s174 = ssub.s32 6144, 6144
          %175 = vsyncadd [#allocation7], %s174
          %s176 = sshll.u32 [#allocation6], 4
          %s177 = int_to_ptr.vmem [resolvable:$true] %s176
          %182 = dma.hbm_to_vmem [thread:$0]  %s1, 6144, %s177, [#allocation7], 128, 128, 8
        $region16: #{tpu_custom_call.1} parent=11 // pred_fallthru
          _
        // Predicated region
        $region17: #{tpu_custom_call.1} parent=11 // pred_check
          %p183 = pneg %p87
        $region18: #{tpu_custom_call.1} parent=11 // pred_check_branch
          %185 = sbr.rel (%p183) target = $region20
        $region19: #{tpu_custom_call.1} parent=11 // pred_region
          %s187 = ssub.s32 6144, 6144
          %188 = vsyncadd [#allocation7], %s187
          %s189 = sshll.u32 [#allocation8], 4
          %s190 = int_to_ptr.vmem [resolvable:$true] %s189
          %195 = dma.hbm_to_vmem [thread:$0]  %s2, 6144, %s190, [#allocation7], 128, 128, 8
        $region20: #{tpu_custom_call.1} parent=11 // pred_fallthru
          _
        // Predicated region
        $region21: #{tpu_custom_call.1} parent=11 // pred_check
          %p196 = pneg %p108
        $region22: #{tpu_custom_call.1} parent=11 // pred_check_branch
          %198 = sbr.rel (%p196) target = $region24
        $region23: #{tpu_custom_call.1} parent=11 // pred_region
          %s200 = ssub.s32 2048, 2048
          %201 = vsyncadd [#allocation10], %s200
          %s202 = sshll.u32 [#allocation9], 4
          %s203 = int_to_ptr.vmem [resolvable:$true] %s202
          %208 = dma.hbm_to_vmem [thread:$0]  %s3, 2048, %s203, [#allocation10], 128, 128, 8
        $region24: #{tpu_custom_call.1} parent=11 // pred_fallthru
          _
        // Predicated region
        $region25: #{tpu_custom_call.1} parent=11 // pred_check
          %p209 = pneg %p129
        $region26: #{tpu_custom_call.1} parent=11 // pred_check_branch
          %211 = sbr.rel (%p209) target = $region28
        $region27: #{tpu_custom_call.1} parent=11 // pred_region
          _
        $region28: #{tpu_custom_call.1} parent=11 // pred_fallthru
          _
      $region12: #{tpu_custom_call.1} parent=5 // pred_fallthru
        _
      %p212 = scmp.lt.s32.totalorder %s19, 2
      // Predicated region
      $region29: #{tpu_custom_call.1} parent=5 // pred_check
        %p213 = pneg %p212
      $region30: #{tpu_custom_call.1} parent=5 // pred_check_branch
        %215 = sbr.rel (%p213) target = $region32
      $region31: #{tpu_custom_call.1} parent=5 // pred_region
        // Predicated region
        $region33: #{tpu_custom_call.1} parent=31 // pred_check
          %p216 = pneg %p39
        $region34: #{tpu_custom_call.1} parent=31 // pred_check_branch
          %218 = sbr.rel (%p216) target = $region36
        $region35: #{tpu_custom_call.1} parent=31 // pred_region
          %s219 = sand.u32 %s29, 1
          %s220 = scalar_lea.sflag [#allocation4], %s219
          %s221 = sand.u32 %s29, 1
          %s222 = smul.addr %s221, 24
          %s223 = scalar_lea.vmem [#allocation3], %s222
          %s225 = ssub.s32 384, 384
          %226 = vsyncadd %s220, %s225
          %s227 = smul.addr %s19, 3
          %s228 = smul.addr %s227, 128
          %s229 = scalar_lea.hbm %s0, %s228
          %s230 = sshll.u32 %s223, 4
          %s231 = int_to_ptr.vmem [resolvable:$true] %s230
          %236 = dma.hbm_to_vmem [thread:$0]  %s229, 384, %s231, %s220, 128, 128, 8
        $region36: #{tpu_custom_call.1} parent=31 // pred_fallthru
          _
      $region32: #{tpu_custom_call.1} parent=5 // pred_fallthru
        _
      %p237 = scmp.le.s32.totalorder 1, %s19
      %p238 = scmp.lt.s32.totalorder %s19, 3
      %p239 = pnand %p237, %p238
      %p240 = pneg %p239
      // Predicated region
      $region37: #{tpu_custom_call.1} parent=5 // pred_check
        _
      $region38: #{tpu_custom_call.1} parent=5 // pred_check_branch
        %242 = sbr.rel (%p239) target = $region40
      $region39: #{tpu_custom_call.1} parent=5 // pred_region
        %s243 = ssub.s32 %s19, 1
        %s244 = sand.u32 %s32, 1
        %s245 = scalar_lea.sflag [#allocation4], %s244
        %s246 = sand.u32 %s32, 1
        %s247 = smul.addr %s246, 24
        %s248 = scalar_lea.vmem [#allocation3], %s247
        // Predicated region
        $region41: #{tpu_custom_call.1} parent=39 // pred_check
          %p249 = pneg %p45
        $region42: #{tpu_custom_call.1} parent=39 // pred_check_branch
          %251 = sbr.rel (%p249) target = $region44
        $region43: #{tpu_custom_call.1} parent=39 // pred_region
          %252 = dma.done %s245, 384
        $region44: #{tpu_custom_call.1} parent=39 // pred_fallthru
          _
        // Predicated region
        $region45: #{tpu_custom_call.1} parent=39 // pred_check
          %p253 = pneg %p66
        $region46: #{tpu_custom_call.1} parent=39 // pred_check_branch
          %255 = sbr.rel (%p253) target = $region48
        $region47: #{tpu_custom_call.1} parent=39 // pred_region
          %256 = dma.done [#allocation7], 6144
        $region48: #{tpu_custom_call.1} parent=39 // pred_fallthru
          _
        // Predicated region
        $region49: #{tpu_custom_call.1} parent=39 // pred_check
          %p257 = pneg %p87
        $region50: #{tpu_custom_call.1} parent=39 // pred_check_branch
          %259 = sbr.rel (%p257) target = $region52
        $region51: #{tpu_custom_call.1} parent=39 // pred_region
          %260 = dma.done [#allocation7], 6144
        $region52: #{tpu_custom_call.1} parent=39 // pred_fallthru
          _
        // Predicated region
        $region53: #{tpu_custom_call.1} parent=39 // pred_check
          %p261 = pneg %p108
        $region54: #{tpu_custom_call.1} parent=39 // pred_check_branch
          %263 = sbr.rel (%p261) target = $region56
        $region55: #{tpu_custom_call.1} parent=39 // pred_region
          %264 = dma.done [#allocation10], 2048
        $region56: #{tpu_custom_call.1} parent=39 // pred_fallthru
          _
        %s265 = sand.u32 %s32, 1
        %s266 = scalar_lea.sflag [#allocation4], %s265
        %s267 = sand.u32 %s32, 1
        %s268 = smul.addr %s267, 24
        %s269 = scalar_lea.vmem [#allocation3], %s268
        %p270 = pneg %p45
        %p271 = pneg %p42
        %p272 = pneg %p66
        %p273 = pneg %p63
        %p274 = pneg %p87
        %p275 = pneg %p84
        %p276 = pneg %p108
        %p277 = pneg %p105
        %p278 = pneg %p129
        %p279 = pneg %p126
        %p280 = pneg %p155
        %p281 = pneg %p152
        %s282 = sand.u32 %s142, 1
        %s283 = scalar_lea.sflag [#allocation5], %s282
        %s284 = sand.u32 %s142, 1
        %s285 = smul.addr %s284, 16
        %s286 = scalar_lea.vmem [#allocation11], %s285
        %s287 = smul.u32 2, %s24
        %v288 = vld [vmem:[%s248] sm:$0xff]
        %v289 = vld [vmem:[%s248 + $0x8] sm:$0xff]
        %v290 = vld [vmem:[%s248 + $0x10] sm:$0xff]
        %v291 = vld [vmem:[%s4] sm:$0x1f]
        %vm295 = vcmask 1045504
        %v296 = vrot.slane %v288, 2
        %v297 = vrot.slane %v289, 2
        %v298 = vsel %vm295, %v296, %v297
        %v299 = vrot.slane %v290, 2
        %v300 = vsel %vm295, %v297, %v299
        %vm303 = vcmask 1043456
        %v304 = vrot.slane %v288, 4
        %v305 = vrot.slane %v289, 4
        %v306 = vsel %vm303, %v304, %v305
        %v307 = vrot.slane %v290, 4
        %v308 = vsel %vm303, %v305, %v307
        %v311 = vld [vmem:[#allocation6] sm:$0xff]
        %v312 = vld [vmem:[#allocation6 + $0x8] sm:$0xff]
        %v313 = vld [vmem:[#allocation6 + $0x10] sm:$0xff]
        %v314 = vld [vmem:[#allocation6 + $0x18] sm:$0xff]
        %v315 = vld [vmem:[#allocation6 + $0x20] sm:$0xff]
        %v316 = vld [vmem:[#allocation6 + $0x28] sm:$0xff]
        %v317 = vld [vmem:[#allocation6 + $0x30] sm:$0xff]
        %v318 = vld [vmem:[#allocation6 + $0x38] sm:$0xff]
        %v319 = vld [vmem:[#allocation6 + $0x40] sm:$0xff]
        %v320 = vld [vmem:[#allocation6 + $0x48] sm:$0xff]
        %v321 = vld [vmem:[#allocation6 + $0x50] sm:$0xff]
        %v322 = vld [vmem:[#allocation6 + $0x58] sm:$0xff]
        %v323 = vld [vmem:[#allocation6 + $0x60] sm:$0xff]
        %v324 = vld [vmem:[#allocation6 + $0x68] sm:$0xff]
        %v325 = vld [vmem:[#allocation6 + $0x70] sm:$0xff]
        %v326 = vld [vmem:[#allocation6 + $0x78] sm:$0xff]
        %v327 = vld [vmem:[#allocation6 + $0x80] sm:$0xff]
        %v328 = vld [vmem:[#allocation6 + $0x88] sm:$0xff]
        %v329 = vld [vmem:[#allocation6 + $0x90] sm:$0xff]
        %v330 = vld [vmem:[#allocation6 + $0x98] sm:$0xff]
        %v331 = vld [vmem:[#allocation6 + $0xa0] sm:$0xff]
        %v332 = vld [vmem:[#allocation6 + $0xa8] sm:$0xff]
        %v333 = vld [vmem:[#allocation6 + $0xb0] sm:$0xff]
        %v334 = vld [vmem:[#allocation6 + $0xb8] sm:$0xff]
        %v335 = vld [vmem:[#allocation6 + $0xc0] sm:$0xff]
        %v336 = vld [vmem:[#allocation6 + $0xc8] sm:$0xff]
        %v337 = vld [vmem:[#allocation6 + $0xd0] sm:$0xff]
        %v338 = vld [vmem:[#allocation6 + $0xd8] sm:$0xff]
        %v339 = vld [vmem:[#allocation6 + $0xe0] sm:$0xff]
        %v340 = vld [vmem:[#allocation6 + $0xe8] sm:$0xff]
        %v341 = vld [vmem:[#allocation6 + $0xf0] sm:$0xff]
        %v342 = vld [vmem:[#allocation6 + $0xf8] sm:$0xff]
        %v343 = vld [vmem:[#allocation6 + $0x100] sm:$0xff]
        %v344 = vld [vmem:[#allocation6 + $0x108] sm:$0xff]
        %v345 = vld [vmem:[#allocation6 + $0x110] sm:$0xff]
        %v346 = vld [vmem:[#allocation6 + $0x118] sm:$0xff]
        %v347 = vld [vmem:[#allocation6 + $0x120] sm:$0xff]
        %v348 = vld [vmem:[#allocation6 + $0x128] sm:$0xff]
        %v349 = vld [vmem:[#allocation6 + $0x130] sm:$0xff]
        %v350 = vld [vmem:[#allocation6 + $0x138] sm:$0xff]
        %v351 = vld [vmem:[#allocation6 + $0x140] sm:$0xff]
        %v352 = vld [vmem:[#allocation6 + $0x148] sm:$0xff]
        %v353 = vld [vmem:[#allocation6 + $0x150] sm:$0xff]
        %v354 = vld [vmem:[#allocation6 + $0x158] sm:$0xff]
        %v355 = vld [vmem:[#allocation6 + $0x160] sm:$0xff]
        %v356 = vld [vmem:[#allocation6 + $0x168] sm:$0xff]
        %v357 = vld [vmem:[#allocation6 + $0x170] sm:$0xff]
        %v358 = vld [vmem:[#allocation6 + $0x178] sm:$0xff]
        %359 = vmatprep.subr.mxu0 0.0
        %360 = vmatpush1.msra.mxu0 %v311
        %361 = vmatprep.subr.mxu0 0.0
        %362 = vmatpush1.msra.mxu0 %v312
        %363 = vmatprep.subr.mxu0 0.0
        %364 = vmatpush1.msra.mxu0 %v313
        %365 = vmatprep.subr.mxu0 0.0
        %366 = vmatpush1.msra.mxu0 %v314
        %367 = vmatprep.subr.mxu0 0.0
        %368 = vmatpush1.msra.mxu0 %v315
        %369 = vmatprep.subr.mxu0 0.0
        %370 = vmatpush1.msra.mxu0 %v316
        %371 = vmatprep.subr.mxu0 0.0
        %372 = vmatpush1.msra.mxu0 %v317
        %373 = vmatprep.subr.mxu0 0.0
        %374 = vmatpush1.msra.mxu0 %v318
        %375 = vmatprep.subr.mxu0 0.0
        %376 = vmatpush1.msra.mxu0 %v319
        %377 = vmatprep.subr.mxu0 0.0
        %378 = vmatpush1.msra.mxu0 %v320
        %379 = vmatprep.subr.mxu0 0.0
        %380 = vmatpush1.msra.mxu0 %v321
        %381 = vmatprep.subr.mxu0 0.0
        %382 = vmatpush1.msra.mxu0 %v322
        %383 = vmatprep.subr.mxu0 0.0
        %384 = vmatpush1.msra.mxu0 %v323
        %385 = vmatprep.subr.mxu0 0.0
        %386 = vmatpush1.msra.mxu0 %v324
        %387 = vmatprep.subr.mxu0 0.0
        %388 = vmatpush1.msra.mxu0 %v325
        %389 = vmatprep.subr.mxu0 0.0
        %390 = vmatpush1.msra.mxu0 %v326
        %391 = vmatprep.subr.mxu0 0.0
        %392 = vmatpush1.msra.mxu0 %v327
        %393 = vmatprep.subr.mxu0 0.0
        %394 = vmatpush1.msra.mxu0 %v328
        %395 = vmatprep.subr.mxu0 0.0
        %396 = vmatpush1.msra.mxu0 %v329
        %397 = vmatprep.subr.mxu0 0.0
        %398 = vmatpush1.msra.mxu0 %v330
        %399 = vmatprep.subr.mxu0 0.0
        %400 = vmatpush1.msra.mxu0 %v331
        %401 = vmatprep.subr.mxu0 0.0
        %402 = vmatpush1.msra.mxu0 %v332
        %403 = vmatprep.subr.mxu0 0.0
        %404 = vmatpush1.msra.mxu0 %v333
        %405 = vmatprep.subr.mxu0 0.0
        %406 = vmatpush1.msra.mxu0 %v334
        %407 = vmatprep.subr.mxu0 0.0
        %408 = vmatpush1.msra.mxu0 %v335
        %409 = vmatprep.subr.mxu0 0.0
        %410 = vmatpush1.msra.mxu0 %v336
        %411 = vmatprep.subr.mxu0 0.0
        %412 = vmatpush1.msra.mxu0 %v337
        %413 = vmatprep.subr.mxu0 0.0
        %414 = vmatpush1.msra.mxu0 %v338
        %415 = vmatprep.subr.mxu0 0.0
        %416 = vmatpush1.msra.mxu0 %v339
        %417 = vmatprep.subr.mxu0 0.0
        %418 = vmatpush1.msra.mxu0 %v340
        %419 = vmatprep.subr.mxu0 0.0
        %420 = vmatpush1.msra.mxu0 %v341
        %421 = vmatprep.subr.mxu0 0.0
        %422 = vmatpush1.msra.mxu0 %v342
        %423 = vmatprep.mubr.f32.mxu0 %v298
        %424 = vmatmul.mubr.f32.gmra.mrb[0].mxu0 %v288
        %v425 = vpop.f32.mrb[0].mxu0
        %v426 = vadd.f32 0.0, %v425
        %v427 = vpop.f32.mrb[0].mxu0
        %428 = vmatprep.mubr.f32.mxu0 %v300
        %429 = vmatmul.mubr.f32.gmra.mrb[0].mxu0 %v289
        %v430 = vpop.f32.mrb[0].mxu0
        %v431 = vadd.f32 0.0, %v430
        %v432 = vpop.f32.mrb[0].mxu0
        %433 = vdwg.mxu0
        %434 = vmatprep.subr.mxu0 0.0
        %435 = vmatpush1.msra.mxu0 %v343
        %436 = vmatprep.subr.mxu0 0.0
        %437 = vmatpush1.msra.mxu0 %v344
        %438 = vmatprep.subr.mxu0 0.0
        %439 = vmatpush1.msra.mxu0 %v345
        %440 = vmatprep.subr.mxu0 0.0
        %441 = vmatpush1.msra.mxu0 %v346
        %442 = vmatprep.subr.mxu0 0.0
        %443 = vmatpush1.msra.mxu0 %v347
        %444 = vmatprep.subr.mxu0 0.0
        %445 = vmatpush1.msra.mxu0 %v348
        %446 = vmatprep.subr.mxu0 0.0
        %447 = vmatpush1.msra.mxu0 %v349
        %448 = vmatprep.subr.mxu0 0.0
        %449 = vmatpush1.msra.mxu0 %v350
        %450 = vmatprep.subr.mxu0 0.0
        %451 = vmatpush1.msra.mxu0 %v351
        %452 = vmatprep.subr.mxu0 0.0
        %453 = vmatpush1.msra.mxu0 %v352
        %454 = vmatprep.subr.mxu0 0.0
        %455 = vmatpush1.msra.mxu0 %v353
        %456 = vmatprep.subr.mxu0 0.0
        %457 = vmatpush1.msra.mxu0 %v354
        %458 = vmatprep.subr.mxu0 0.0
        %459 = vmatpush1.msra.mxu0 %v355
        %460 = vmatprep.subr.mxu0 0.0
        %461 = vmatpush1.msra.mxu0 %v356
        %462 = vmatprep.subr.mxu0 0.0
        %463 = vmatpush1.msra.mxu0 %v357
        %464 = vmatprep.subr.mxu0 0.0
        %465 = vmatpush1.msra.mxu0 %v358
        %466 = vmatprep.subr.mxu0 0.0
        %467 = vmatpush1.msra.mxu0 0.0
        %468 = vmatprep.subr.mxu0 0.0
        %469 = vmatpush1.msra.mxu0 0.0
        %470 = vmatprep.subr.mxu0 0.0
        %471 = vmatpush1.msra.mxu0 0.0
        %472 = vmatprep.subr.mxu0 0.0
        %473 = vmatpush1.msra.mxu0 0.0
        %474 = vmatprep.subr.mxu0 0.0
        %475 = vmatpush1.msra.mxu0 0.0
        %476 = vmatprep.subr.mxu0 0.0
        %477 = vmatpush1.msra.mxu0 0.0
        %478 = vmatprep.subr.mxu0 0.0
        %479 = vmatpush1.msra.mxu0 0.0
        %480 = vmatprep.subr.mxu0 0.0
        %481 = vmatpush1.msra.mxu0 0.0
        %482 = vmatprep.subr.mxu0 0.0
        %483 = vmatpush1.msra.mxu0 0.0
        %484 = vmatprep.subr.mxu0 0.0
        %485 = vmatpush1.msra.mxu0 0.0
        %486 = vmatprep.subr.mxu0 0.0
        %487 = vmatpush1.msra.mxu0 0.0
        %488 = vmatprep.subr.mxu0 0.0
        %489 = vmatpush1.msra.mxu0 0.0
        %490 = vmatprep.subr.mxu0 0.0
        %491 = vmatpush1.msra.mxu0 0.0
        %492 = vmatprep.subr.mxu0 0.0
        %493 = vmatpush1.msra.mxu0 0.0
        %494 = vmatprep.subr.mxu0 0.0
        %495 = vmatpush1.msra.mxu0 0.0
        %496 = vmatprep.subr.mxu0 0.0
        %497 = vmatpush1.msra.mxu0 0.0
        %498 = vmatprep.mubr.f32.mxu0 0.0
        %499 = vmatmul.mubr.f32.gmra.mrb[0].mxu0 %v306
        %v500 = vpop.f32.mrb[0].mxu0
        %v501 = vadd.f32 %v426, %v500
        %v502 = vpop.f32.mrb[0].mxu0
        %503 = vmatprep.mubr.f32.mxu0 0.0
        %504 = vmatmul.mubr.f32.gmra.mrb[0].mxu0 %v308
        %v505 = vpop.f32.mrb[0].mxu0
        %v506 = vadd.f32 %v431, %v505
        %v507 = vpop.f32.mrb[0].mxu0
        %508 = vdwg.mxu0
        %v509 = vlaneseq
        %v510 = vshrl.u32 %v509, 7
        %v511 = vsub.s32 0, %v510
        %v512 = vrot.slane %v291, %v511
        %v513 = vmul.f32 %v501, %v512
        %v514 = vmul.f32 %v506, %v512
        %v515 = vlaneseq
        %v516 = vshrl.u32 %v515, 7
        %v517 = vsub.s32 1, %v516
        %v518 = vrot.slane %v291, %v517
        %v519 = vadd.f32 %v513, %v518
        %v520 = vadd.f32 %v514, %v518
        %v521 = vmax.f32 %v519, 0.0
        %v522 = vmax.f32 %v520, 0.0
        %523 = vst [vmem:[#allocation2] sm:$0xff] 0.0
        %524 = vst [vmem:[#allocation2 + $0x18] sm:$0xff] 0.0
        %525 = vst [vmem:[#allocation2 + $0x8] sm:$0xff] %v521
        %526 = vst [vmem:[#allocation2 + $0x10] sm:$0xff] %v522
        %v527 = vld [vmem:[#allocation2] sm:$0xff]
        %v528 = vld [vmem:[#allocation2 + $0x8] sm:$0xff]
        %v529 = vld [vmem:[#allocation2 + $0x10] sm:$0xff]
        %v530 = vld [vmem:[#allocation2 + $0x18] sm:$0xff]
        %v533 = vrot.slane %v528, 2
        %v534 = vrot.slane %v529, 2
        %v535 = vsel %vm295, %v533, %v534
        %v537 = vrot.slane %v528, 4
        %v538 = vrot.slane %v529, 4
        %v539 = vsel %vm303, %v537, %v538
        %v540 = vrot.slane %v530, 4
        %v541 = vsel %vm303, %v538, %v540
        %v542 = vld [vmem:[#allocation8] sm:$0xff]
        %v543 = vld [vmem:[#allocation8 + $0x8] sm:$0xff]
        %v544 = vld [vmem:[#allocation8 + $0x10] sm:$0xff]
        %v545 = vld [vmem:[#allocation8 + $0x18] sm:$0xff]
        %v546 = vld [vmem:[#allocation8 + $0x20] sm:$0xff]
        %v547 = vld [vmem:[#allocation8 + $0x28] sm:$0xff]
        %v548 = vld [vmem:[#allocation8 + $0x30] sm:$0xff]
        %v549 = vld [vmem:[#allocation8 + $0x38] sm:$0xff]
        %v550 = vld [vmem:[#allocation8 + $0x40] sm:$0xff]
        %v551 = vld [vmem:[#allocation8 + $0x48] sm:$0xff]
        %v552 = vld [vmem:[#allocation8 + $0x50] sm:$0xff]
        %v553 = vld [vmem:[#allocation8 + $0x58] sm:$0xff]
        %v554 = vld [vmem:[#allocation8 + $0x60] sm:$0xff]
        %v555 = vld [vmem:[#allocation8 + $0x68] sm:$0xff]
        %v556 = vld [vmem:[#allocation8 + $0x70] sm:$0xff]
        %v557 = vld [vmem:[#allocation8 + $0x78] sm:$0xff]
        %v558 = vld [vmem:[#allocation8 + $0x80] sm:$0xff]
        %v559 = vld [vmem:[#allocation8 + $0x88] sm:$0xff]
        %v560 = vld [vmem:[#allocation8 + $0x90] sm:$0xff]
        %v561 = vld [vmem:[#allocation8 + $0x98] sm:$0xff]
        %v562 = vld [vmem:[#allocation8 + $0xa0] sm:$0xff]
        %v563 = vld [vmem:[#allocation8 + $0xa8] sm:$0xff]
        %v564 = vld [vmem:[#allocation8 + $0xb0] sm:$0xff]
        %v565 = vld [vmem:[#allocation8 + $0xb8] sm:$0xff]
        %v566 = vld [vmem:[#allocation8 + $0xc0] sm:$0xff]
        %v567 = vld [vmem:[#allocation8 + $0xc8] sm:$0xff]
        %v568 = vld [vmem:[#allocation8 + $0xd0] sm:$0xff]
        %v569 = vld [vmem:[#allocation8 + $0xd8] sm:$0xff]
        %v570 = vld [vmem:[#allocation8 + $0xe0] sm:$0xff]
        %v571 = vld [vmem:[#allocation8 + $0xe8] sm:$0xff]
        %v572 = vld [vmem:[#allocation8 + $0xf0] sm:$0xff]
        %v573 = vld [vmem:[#allocation8 + $0xf8] sm:$0xff]
        %v574 = vld [vmem:[#allocation8 + $0x100] sm:$0xff]
        %v575 = vld [vmem:[#allocation8 + $0x108] sm:$0xff]
        %v576 = vld [vmem:[#allocation8 + $0x110] sm:$0xff]
        %v577 = vld [vmem:[#allocation8 + $0x118] sm:$0xff]
        %v578 = vld [vmem:[#allocation8 + $0x120] sm:$0xff]
        %v579 = vld [vmem:[#allocation8 + $0x128] sm:$0xff]
        %v580 = vld [vmem:[#allocation8 + $0x130] sm:$0xff]
        %v581 = vld [vmem:[#allocation8 + $0x138] sm:$0xff]
        %v582 = vld [vmem:[#allocation8 + $0x140] sm:$0xff]
        %v583 = vld [vmem:[#allocation8 + $0x148] sm:$0xff]
        %v584 = vld [vmem:[#allocation8 + $0x150] sm:$0xff]
        %v585 = vld [vmem:[#allocation8 + $0x158] sm:$0xff]
        %v586 = vld [vmem:[#allocation8 + $0x160] sm:$0xff]
        %v587 = vld [vmem:[#allocation8 + $0x168] sm:$0xff]
        %v588 = vld [vmem:[#allocation8 + $0x170] sm:$0xff]
        %v589 = vld [vmem:[#allocation8 + $0x178] sm:$0xff]
        %vm591 = vcmask 1041408
        %v592 = vrot.slane %v527, 6
        %v593 = vrot.slane %v528, 6
        %v594 = vsel %vm591, %v592, %v593
        %v595 = vrot.slane %v533, 6
        %v596 = vrot.slane %v535, 6
        %v597 = vsel %vm591, %v595, %v596
        %v598 = vrot.slane %v537, 6
        %v599 = vrot.slane %v539, 6
        %v600 = vsel %vm591, %v598, %v599
        %v601 = vrot.slane %v529, 6
        %v602 = vsel %vm591, %v593, %v601
        %v603 = vrot.slane %v534, 6
        %v604 = vsel %vm591, %v596, %v603
        %v605 = vrot.slane %v541, 6
        %v606 = vsel %vm591, %v599, %v605
        %613 = vmatprep.subr.mxu0 0.0
        %614 = vmatpush1.msra.mxu0 %v542
        %615 = vmatprep.subr.mxu0 0.0
        %616 = vmatpush1.msra.mxu0 %v543
        %617 = vmatprep.subr.mxu0 0.0
        %618 = vmatpush1.msra.mxu0 %v544
        %619 = vmatprep.subr.mxu0 0.0
        %620 = vmatpush1.msra.mxu0 %v545
        %621 = vmatprep.subr.mxu0 0.0
        %622 = vmatpush1.msra.mxu0 %v546
        %623 = vmatprep.subr.mxu0 0.0
        %624 = vmatpush1.msra.mxu0 %v547
        %625 = vmatprep.subr.mxu0 0.0
        %626 = vmatpush1.msra.mxu0 %v548
        %627 = vmatprep.subr.mxu0 0.0
        %628 = vmatpush1.msra.mxu0 %v549
        %629 = vmatprep.subr.mxu0 0.0
        %630 = vmatpush1.msra.mxu0 %v550
        %631 = vmatprep.subr.mxu0 0.0
        %632 = vmatpush1.msra.mxu0 %v551
        %633 = vmatprep.subr.mxu0 0.0
        %634 = vmatpush1.msra.mxu0 %v552
        %635 = vmatprep.subr.mxu0 0.0
        %636 = vmatpush1.msra.mxu0 %v553
        %637 = vmatprep.subr.mxu0 0.0
        %638 = vmatpush1.msra.mxu0 %v554
        %639 = vmatprep.subr.mxu0 0.0
        %640 = vmatpush1.msra.mxu0 %v555
        %641 = vmatprep.subr.mxu0 0.0
        %642 = vmatpush1.msra.mxu0 %v556
        %643 = vmatprep.subr.mxu0 0.0
        %644 = vmatpush1.msra.mxu0 %v557
        %645 = vmatprep.subr.mxu0 0.0
        %646 = vmatpush1.msra.mxu0 %v558
        %647 = vmatprep.subr.mxu0 0.0
        %648 = vmatpush1.msra.mxu0 %v559
        %649 = vmatprep.subr.mxu0 0.0
        %650 = vmatpush1.msra.mxu0 %v560
        %651 = vmatprep.subr.mxu0 0.0
        %652 = vmatpush1.msra.mxu0 %v561
        %653 = vmatprep.subr.mxu0 0.0
        %654 = vmatpush1.msra.mxu0 %v562
        %655 = vmatprep.subr.mxu0 0.0
        %656 = vmatpush1.msra.mxu0 %v563
        %657 = vmatprep.subr.mxu0 0.0
        %658 = vmatpush1.msra.mxu0 %v564
        %659 = vmatprep.subr.mxu0 0.0
        %660 = vmatpush1.msra.mxu0 %v565
        %661 = vmatprep.subr.mxu0 0.0
        %662 = vmatpush1.msra.mxu0 %v566
        %663 = vmatprep.subr.mxu0 0.0
        %664 = vmatpush1.msra.mxu0 %v567
        %665 = vmatprep.subr.mxu0 0.0
        %666 = vmatpush1.msra.mxu0 %v568
        %667 = vmatprep.subr.mxu0 0.0
        %668 = vmatpush1.msra.mxu0 %v569
        %669 = vmatprep.subr.mxu0 0.0
        %670 = vmatpush1.msra.mxu0 %v570
        %671 = vmatprep.subr.mxu0 0.0
        %672 = vmatpush1.msra.mxu0 %v571
        %673 = vmatprep.subr.mxu0 0.0
        %674 = vmatpush1.msra.mxu0 %v572
        %675 = vmatprep.subr.mxu0 0.0
        %676 = vmatpush1.msra.mxu0 %v573
        %677 = vmatprep.mubr.f32.mxu0 %v597
        %678 = vmatmul.mubr.f32.gmra.mrb[0].mxu0 %v594
        %v679 = vpop.f32.mrb[0].mxu0
        %v680 = vadd.f32 0.0, %v679
        %v681 = vpop.f32.mrb[0].mxu0
        %682 = vmatprep.mubr.f32.mxu0 %v604
        %683 = vmatmul.mubr.f32.gmra.mrb[0].mxu0 %v602
        %v684 = vpop.f32.mrb[0].mxu0
        %v685 = vadd.f32 0.0, %v684
        %v686 = vpop.f32.mrb[0].mxu0
        %687 = vdwg.mxu0
        %688 = vmatprep.subr.mxu0 0.0
        %689 = vmatpush1.msra.mxu0 %v574
        %690 = vmatprep.subr.mxu0 0.0
        %691 = vmatpush1.msra.mxu0 %v575
        %692 = vmatprep.subr.mxu0 0.0
        %693 = vmatpush1.msra.mxu0 %v576
        %694 = vmatprep.subr.mxu0 0.0
        %695 = vmatpush1.msra.mxu0 %v577
        %696 = vmatprep.subr.mxu0 0.0
        %697 = vmatpush1.msra.mxu0 %v578
        %698 = vmatprep.subr.mxu0 0.0
        %699 = vmatpush1.msra.mxu0 %v579
        %700 = vmatprep.subr.mxu0 0.0
        %701 = vmatpush1.msra.mxu0 %v580
        %702 = vmatprep.subr.mxu0 0.0
        %703 = vmatpush1.msra.mxu0 %v581
        %704 = vmatprep.subr.mxu0 0.0
        %705 = vmatpush1.msra.mxu0 %v582
        %706 = vmatprep.subr.mxu0 0.0
        %707 = vmatpush1.msra.mxu0 %v583
        %708 = vmatprep.subr.mxu0 0.0
        %709 = vmatpush1.msra.mxu0 %v584
        %710 = vmatprep.subr.mxu0 0.0
        %711 = vmatpush1.msra.mxu0 %v585
        %712 = vmatprep.subr.mxu0 0.0
        %713 = vmatpush1.msra.mxu0 %v586
        %714 = vmatprep.subr.mxu0 0.0
        %715 = vmatpush1.msra.mxu0 %v587
        %716 = vmatprep.subr.mxu0 0.0
        %717 = vmatpush1.msra.mxu0 %v588
        %718 = vmatprep.subr.mxu0 0.0
        %719 = vmatpush1.msra.mxu0 %v589
        %720 = vmatprep.subr.mxu0 0.0
        %721 = vmatpush1.msra.mxu0 0.0
        %722 = vmatprep.subr.mxu0 0.0
        %723 = vmatpush1.msra.mxu0 0.0
        %724 = vmatprep.subr.mxu0 0.0
        %725 = vmatpush1.msra.mxu0 0.0
        %726 = vmatprep.subr.mxu0 0.0
        %727 = vmatpush1.msra.mxu0 0.0
        %728 = vmatprep.subr.mxu0 0.0
        %729 = vmatpush1.msra.mxu0 0.0
        %730 = vmatprep.subr.mxu0 0.0
        %731 = vmatpush1.msra.mxu0 0.0
        %732 = vmatprep.subr.mxu0 0.0
        %733 = vmatpush1.msra.mxu0 0.0
        %734 = vmatprep.subr.mxu0 0.0
        %735 = vmatpush1.msra.mxu0 0.0
        %736 = vmatprep.subr.mxu0 0.0
        %737 = vmatpush1.msra.mxu0 0.0
        %738 = vmatprep.subr.mxu0 0.0
        %739 = vmatpush1.msra.mxu0 0.0
        %740 = vmatprep.subr.mxu0 0.0
        %741 = vmatpush1.msra.mxu0 0.0
        %742 = vmatprep.subr.mxu0 0.0
        %743 = vmatpush1.msra.mxu0 0.0
        %744 = vmatprep.subr.mxu0 0.0
        %745 = vmatpush1.msra.mxu0 0.0
        %746 = vmatprep.subr.mxu0 0.0
        %747 = vmatpush1.msra.mxu0 0.0
        %748 = vmatprep.subr.mxu0 0.0
        %749 = vmatpush1.msra.mxu0 0.0
        %750 = vmatprep.subr.mxu0 0.0
        %751 = vmatpush1.msra.mxu0 0.0
        %752 = vmatprep.mubr.f32.mxu0 0.0
        %753 = vmatmul.mubr.f32.gmra.mrb[0].mxu0 %v600
        %v754 = vpop.f32.mrb[0].mxu0
        %v755 = vadd.f32 %v680, %v754
        %v756 = vpop.f32.mrb[0].mxu0
        %757 = vmatprep.mubr.f32.mxu0 0.0
        %758 = vmatmul.mubr.f32.gmra.mrb[0].mxu0 %v606
        %v759 = vpop.f32.mrb[0].mxu0
        %v760 = vadd.f32 %v685, %v759
        %v761 = vpop.f32.mrb[0].mxu0
        %762 = vdwg.mxu0
        %v763 = vlaneseq
        %v764 = vshrl.u32 %v763, 7
        %v765 = vsub.s32 2, %v764
        %v766 = vrot.slane %v291, %v765
        %v767 = vmul.f32 %v755, %v766
        %v768 = vmul.f32 %v760, %v766
        %v769 = vlaneseq
        %v770 = vshrl.u32 %v769, 7
        %v771 = vsub.s32 3, %v770
        %v772 = vrot.slane %v291, %v771
        %v773 = vadd.f32 %v767, %v772
        %v774 = vadd.f32 %v768, %v772
        %v775 = vmax.f32 %v773, 0.0
        %v776 = vmax.f32 %v774, 0.0
        %v777 = vld [vmem:[#allocation9] sm:$0xff]
        %v778 = vld [vmem:[#allocation9 + $0x8] sm:$0xff]
        %v779 = vld [vmem:[#allocation9 + $0x10] sm:$0xff]
        %v780 = vld [vmem:[#allocation9 + $0x18] sm:$0xff]
        %v781 = vld [vmem:[#allocation9 + $0x20] sm:$0xff]
        %v782 = vld [vmem:[#allocation9 + $0x28] sm:$0xff]
        %v783 = vld [vmem:[#allocation9 + $0x30] sm:$0xff]
        %v784 = vld [vmem:[#allocation9 + $0x38] sm:$0xff]
        %v785 = vld [vmem:[#allocation9 + $0x40] sm:$0xff]
        %v786 = vld [vmem:[#allocation9 + $0x48] sm:$0xff]
        %v787 = vld [vmem:[#allocation9 + $0x50] sm:$0xff]
        %v788 = vld [vmem:[#allocation9 + $0x58] sm:$0xff]
        %v789 = vld [vmem:[#allocation9 + $0x60] sm:$0xff]
        %v790 = vld [vmem:[#allocation9 + $0x68] sm:$0xff]
        %v791 = vld [vmem:[#allocation9 + $0x70] sm:$0xff]
        %v792 = vld [vmem:[#allocation9 + $0x78] sm:$0xff]
        %v793 = vlaneseq
        %v794 = vshrl.u32 %v793, 7
        %v795 = vsub.s32 4, %v794
        %v796 = vrot.slane %v291, %v795
        %797 = vmatprep.subr.mxu0 0.0
        %798 = vmatpush1.msra.mxu0 %v777
        %799 = vmatprep.subr.mxu0 0.0
        %800 = vmatpush1.msra.mxu0 %v778
        %801 = vmatprep.subr.mxu0 0.0
        %802 = vmatpush1.msra.mxu0 %v779
        %803 = vmatprep.subr.mxu0 0.0
        %804 = vmatpush1.msra.mxu0 %v780
        %805 = vmatprep.subr.mxu0 0.0
        %806 = vmatpush1.msra.mxu0 %v781
        %807 = vmatprep.subr.mxu0 0.0
        %808 = vmatpush1.msra.mxu0 %v782
        %809 = vmatprep.subr.mxu0 0.0
        %810 = vmatpush1.msra.mxu0 %v783
        %811 = vmatprep.subr.mxu0 0.0
        %812 = vmatpush1.msra.mxu0 %v784
        %813 = vmatprep.subr.mxu0 0.0
        %814 = vmatpush1.msra.mxu0 %v785
        %815 = vmatprep.subr.mxu0 0.0
        %816 = vmatpush1.msra.mxu0 %v786
        %817 = vmatprep.subr.mxu0 0.0
        %818 = vmatpush1.msra.mxu0 %v787
        %819 = vmatprep.subr.mxu0 0.0
        %820 = vmatpush1.msra.mxu0 %v788
        %821 = vmatprep.subr.mxu0 0.0
        %822 = vmatpush1.msra.mxu0 %v789
        %823 = vmatprep.subr.mxu0 0.0
        %824 = vmatpush1.msra.mxu0 %v790
        %825 = vmatprep.subr.mxu0 0.0
        %826 = vmatpush1.msra.mxu0 %v791
        %827 = vmatprep.subr.mxu0 0.0
        %828 = vmatpush1.msra.mxu0 %v792
        %829 = vmatprep.subr.mxu0 0.0
        %830 = vmatpush1.msra.mxu0 0.0
        %831 = vmatprep.subr.mxu0 0.0
        %832 = vmatpush1.msra.mxu0 0.0
        %833 = vmatprep.subr.mxu0 0.0
        %834 = vmatpush1.msra.mxu0 0.0
        %835 = vmatprep.subr.mxu0 0.0
        %836 = vmatpush1.msra.mxu0 0.0
        %837 = vmatprep.subr.mxu0 0.0
        %838 = vmatpush1.msra.mxu0 0.0
        %839 = vmatprep.subr.mxu0 0.0
        %840 = vmatpush1.msra.mxu0 0.0
        %841 = vmatprep.subr.mxu0 0.0
        %842 = vmatpush1.msra.mxu0 0.0
        %843 = vmatprep.subr.mxu0 0.0
        %844 = vmatpush1.msra.mxu0 0.0
        %845 = vmatprep.subr.mxu0 0.0
        %846 = vmatpush1.msra.mxu0 0.0
        %847 = vmatprep.subr.mxu0 0.0
        %848 = vmatpush1.msra.mxu0 0.0
        %849 = vmatprep.subr.mxu0 0.0
        %850 = vmatpush1.msra.mxu0 0.0
        %851 = vmatprep.subr.mxu0 0.0
        %852 = vmatpush1.msra.mxu0 0.0
        %853 = vmatprep.subr.mxu0 0.0
        %854 = vmatpush1.msra.mxu0 0.0
        %855 = vmatprep.subr.mxu0 0.0
        %856 = vmatpush1.msra.mxu0 0.0
        %857 = vmatprep.subr.mxu0 0.0
        %858 = vmatpush1.msra.mxu0 0.0
        %859 = vmatprep.subr.mxu0 0.0
        %860 = vmatpush1.msra.mxu0 0.0
        %861 = vmatprep.mubr.f32.mxu0 0.0
        %862 = vmatmul.mubr.f32.gmra.mrb[0].mxu0 %v298
        %v863 = vpop.f32.mrb[0].mxu0
        %v864 = vadd.f32 %v796, %v863
        %v865 = vpop.f32.mrb[0].mxu0
        %866 = vmatprep.mubr.f32.mxu0 0.0
        %867 = vmatmul.mubr.f32.gmra.mrb[0].mxu0 %v300
        %v868 = vpop.f32.mrb[0].mxu0
        %v869 = vadd.f32 %v796, %v868
        %v870 = vpop.f32.mrb[0].mxu0
        %871 = vdwg.mxu0
        %v872 = vadd.f32 %v775, %v864
        %v873 = vadd.f32 %v776, %v869
        %v874 = vmax.f32 %v872, 0.0
        %v875 = vmax.f32 %v873, 0.0
        %876 = vst [vmem:[%s286] sm:$0xff] %v874
        %877 = vst [vmem:[%s286 + $0x8] sm:$0xff] %v875
        %s878 = sand.u32 %s142, 1
        %s879 = scalar_lea.sflag [#allocation5], %s878
        %s880 = sand.u32 %s142, 1
        %s881 = smul.addr %s880, 16
        %s882 = scalar_lea.vmem [#allocation11], %s881
        // Predicated region
        $region57: #{tpu_custom_call.1} parent=39 // pred_check
          %p883 = pneg %p152
        $region58: #{tpu_custom_call.1} parent=39 // pred_check_branch
          %885 = sbr.rel (%p883) target = $region60
        $region59: #{tpu_custom_call.1} parent=39 // pred_region
          %s886 = smul.u32 2, %s24
          %s888 = ssub.s32 256, 256
          %889 = vsyncadd %s879, %s888
          %s890 = smul.addr %s886, 128
          %s891 = scalar_lea.hbm %s5, %s890
          %s892 = sshll.u32 %s882, 4
          %s893 = int_to_ptr.vmem [resolvable:$true] %s892
          %898 = dma.vmem_to_hbm [thread:$0]  %s893, 256, %s891, %s879, 128, 128, 8
        $region60: #{tpu_custom_call.1} parent=39 // pred_fallthru
          _
      $region40: #{tpu_custom_call.1} parent=5 // pred_fallthru
        _
      %p899 = scmp.le.s32.totalorder 2, %s19
      // Predicated region
      $region61: #{tpu_custom_call.1} parent=5 // pred_check
        %p900 = pneg %p899
      $region62: #{tpu_custom_call.1} parent=5 // pred_check_branch
        %902 = sbr.rel (%p900) target = $region64
      $region63: #{tpu_custom_call.1} parent=5 // pred_region
        %s903 = ssub.s32 %s19, 2
        // Predicated region
        $region65: #{tpu_custom_call.1} parent=63 // pred_check
          %p904 = pneg %p158
        $region66: #{tpu_custom_call.1} parent=63 // pred_check_branch
          %906 = sbr.rel (%p904) target = $region68
        $region67: #{tpu_custom_call.1} parent=63 // pred_region
          %s907 = sand.u32 %s143, 1
          %s908 = scalar_lea.sflag [#allocation5], %s907
          %s909 = sand.u32 %s143, 1
          %s910 = smul.addr %s909, 16
          %s911 = scalar_lea.vmem [#allocation11], %s910
          %912 = dma.done %s908, 256
        $region68: #{tpu_custom_call.1} parent=63 // pred_fallthru
          _
      $region64: #{tpu_custom_call.1} parent=5 // pred_fallthru
        _
    $region6: #{tpu_custom_call.1} parent=1 // loop_footer
      %s23 = sadd.s32 1, %s19
    $region7: #{tpu_custom_call.1} parent=1 // loop_footer_branch
      %18 = sbr.rel target = $region3
    $region8: #{tpu_custom_call.1} parent=1 // loop_exit
      _
    %913 = vsyncpa [#allocation4], 1
    %s914 = scalar_lea.sflag [#allocation4], 1
    %915 = vsyncpa %s914, 1
    %916 = vsyncpa [#allocation7], 1
    %917 = vsyncpa [#allocation10], 1
    %918 = vsyncpa [#allocation5], 1
    %s919 = scalar_lea.sflag [#allocation5], 1
    %920 = vsyncpa %s919, 1

</llo_original>
